<compile_context>
chip_gen: v6e
topology: v6e:2x2x1
jax: 0.10.0
libtpu: 0.0.40
codegen_flags: <defaults>
</compile_context>

<pallas_src>
import math
import functools

import jax
import jax.numpy as jnp
from jax import lax
from jax.experimental import pallas as pl
from jax.experimental.pallas import tpu as pltpu


_LANE = 128          # hidden dim padded to a multiple of this (lane width)
_MIN_TB = 16         # min batch tile (bf16 sublane tile is 16 rows)
_MAX_TB = 128        # MXU M rows
_MAX_TC = 64         # max time steps per grid step
_CARRY_ELEMS = 8192  # carry h/c in registers below this tb*Hp (vreg budget)


def _vmem_capacity_bytes():
    """Physical VMEM per TensorCore; conservative 64 MiB fallback (v7x)."""
    try:
        return int(pltpu.get_tpu_info().vmem_capacity_bytes)
    except Exception:
        return 64 << 20


def _pick_batch_tile(batch):
    """Batch tile: up to 128 MXU rows, >=2 tiles when possible (v7x megacore)."""
    bp0 = -(-batch // _MIN_TB) * _MIN_TB
    if bp0 <= _MIN_TB:
        tb = _MIN_TB
    else:
        tb = min(_MAX_TB, -(-(bp0 // 2) // _MIN_TB) * _MIN_TB)
    nb = -(-bp0 // tb)
    return tb, nb * tb


def _pick_time_chunk(seq_len, tb, hp, budget):
    """Largest multiple-of-8 time chunk that keeps the double-buffered bf16
    gate/hidden chunks (plus single-buffered weight and f32 state) in budget."""
    per_step = 2 * tb * (4 * hp + hp) * 2              # double-buffered bf16 g + out
    fixed = hp * 4 * hp * 2 + 2 * tb * hp * 4 + (4 << 20)
    tc_cap = max(8, ((budget - fixed) // max(per_step, 1)) // 8 * 8)
    tc = int(min(_MAX_TC, -(-seq_len // 8) * 8, tc_cap))
    sp = -(-seq_len // tc) * tc
    return tc, sp


def _vmem_limit_bytes(tc, tb, hp):
    """Explicit VMEM budget, clamped below the chip's physical capacity."""
    cap = _vmem_capacity_bytes()
    g_blk = tc * tb * 4 * hp * 2       # bf16 gate chunk
    o_blk = tc * tb * hp * 2           # bf16 hidden chunk
    w_blk = hp * 4 * hp * 2            # bf16 Wh (single-buffered scratch copy)
    hc = 2 * tb * hp * 4               # f32 h/c state
    need = 2 * (g_blk + o_blk) + w_blk + hc + (8 << 20)
    return int(min(int(cap * 0.9), max(need, 16 << 20)))


def _lstm_kernel(g_ref, wh_hbm, h_out_ref, wh_vmem, h_scr, c_scr, dma_sem):
    """One grid step == T time steps of the recurrence for one batch tile.

    g_ref     : (T, TB, 4Hp) bf16  precomputed x_t @ Wx + b (f|i|o|cand)
    wh_hbm    : (Hp, 4Hp)    bf16  fused hidden->gate weights (raw HBM ref)
    h_out_ref : (T, TB, Hp)  bf16  hidden states emitted for this chunk
    wh_vmem   : (Hp, 4Hp)    bf16  single VMEM copy of the weights (scratch)
    h_scr/c_scr : (TB, Hp)   f32   persistent recurrent state (per batch tile)

    NOTE: correctness relies on time being the trailing (fastest) grid axis:
    state is re-initialized (and the weight re-copied) whenever t_blk == 0,
    i.e. at the start of each batch tile's sweep.  Do not reorder the grid.
    """
    t_blk = pl.program_id(1)

    @pl.when(t_blk == 0)
    def _():
        h_scr[...] = jnp.zeros_like(h_scr)
        c_scr[...] = jnp.zeros_like(c_scr)
        # Loop-invariant weight: one VMEM-resident copy, no double buffering.
        cp = pltpu.make_async_copy(wh_hbm, wh_vmem, dma_sem)
        cp.start()
        cp.wait()

    T = g_ref.shape[0]
    tb, Hp = h_scr.shape
    wh = wh_vmem[...]                       # bf16 (Hp, 4Hp), reused by all steps

    def cell(h, c, g_slab):
        # Single fused (TB,Hp)@(Hp,4Hp) bf16 MXU matmul, f32 accumulation.
        gates = g_slab.astype(jnp.float32) + jnp.dot(
            h.astype(jnp.bfloat16), wh, preferred_element_type=jnp.float32)
        # sigmoid via the tanh identity: one EUP pass over the f|i|o slab.
        sig = 0.5 * jnp.tanh(0.5 * gates[:, : 3 * Hp]) + 0.5
        cand = jnp.tanh(gates[:, 3 * Hp:])
        f_t = sig[:, :Hp]
        i_t = sig[:, Hp:2 * Hp]
        o_t = sig[:, 2 * Hp:]
        c_new = f_t * c + i_t * cand
        h_new = o_t * jnp.tanh(c_new)
        return h_new, c_new

    if tb * Hp <= _CARRY_ELEMS:
        # Small state: carry h/c through an unrolled loop (fits in vregs).
        def step(s, carry):
            h, c = carry
            h_new, c_new = cell(h, c, g_ref[s])
            h_out_ref[pl.ds(s, 1)] = h_new[None].astype(h_out_ref.dtype)
            return h_new, c_new

        h_f, c_f = lax.fori_loop(0, T, step, (h_scr[...], c_scr[...]),
                                 unroll=min(int(T), 8))
        h_scr[...] = h_f
        c_scr[...] = c_f
    else:
        # Large state: read/modify/write the VMEM scratch each step so the
        # loop carry does not blow past the 64-vreg budget (avoids spills).
        def step(s, _):
            h_new, c_new = cell(h_scr[...], c_scr[...], g_ref[s])
            h_scr[...] = h_new
            c_scr[...] = c_new
            h_out_ref[pl.ds(s, 1)] = h_new[None].astype(h_out_ref.dtype)
            return 0

        lax.fori_loop(0, T, step, 0, unroll=2)


@functools.partial(jax.jit,
                   static_argnames=("hidden", "t_chunk", "tb", "vmem_limit"))
def _lstm_recurrence(g_tm, wh, *, hidden, t_chunk, tb, vmem_limit):
    """g_tm: (Sp, Bp, 4Hp) bf16 time-major gate stream -> (Sp, Bp, Hp) bf16."""
    Sp, Bp, G4 = g_tm.shape
    Hp = hidden
    nb = Bp // tb
    nt = Sp // t_chunk

    return pl.pallas_call(
        _lstm_kernel,
        out_shape=jax.ShapeDtypeStruct((Sp, Bp, Hp), jnp.bfloat16),
        grid_spec=pltpu.PrefetchScalarGridSpec(
            num_scalar_prefetch=0,
            grid=(nb, nt),                                # (batch tiles, time) - time LAST
            in_specs=[
                pl.BlockSpec((t_chunk, tb, G4), lambda b, t: (t, b, 0)),   # gate chunk
                pl.BlockSpec(memory_space=pl.ANY),                         # Wh stays in HBM
            ],
            out_specs=pl.BlockSpec((t_chunk, tb, Hp), lambda b, t: (t, b, 0)),
            scratch_shapes=[
                pltpu.VMEM((Hp, 4 * Hp), jnp.bfloat16),   # single-buffered Wh copy
                pltpu.VMEM((tb, Hp), jnp.float32),        # h_t
                pltpu.VMEM((tb, Hp), jnp.float32),        # c_t
                pltpu.SemaphoreType.DMA,                  # weight-copy semaphore
            ],
        ),
        compiler_params=pltpu.CompilerParams(
            # Batch tiles are independent (megacore on v7x); time is the recurrence.
            dimension_semantics=("parallel", "arbitrary"),
            vmem_limit_bytes=int(vmem_limit),
        ),
    )(g_tm, wh)


def _xavier_uniform(key, shape):
    # shape is PyTorch Linear weight layout: (fan_out, fan_in)
    fan_out, fan_in = shape
    bound = math.sqrt(6.0 / (fan_in + fan_out))
    return jax.random.uniform(key, shape, jnp.float32, -bound, bound)


class OwnLSTMPallas:
    """JAX/Pallas port of the PyTorch OwnLSTM forward pass."""

    # Fused gate order along the 4Hp lane axis (sigmoid gates first so the
    # kernel applies one tanh-identity sigmoid over a single 3Hp slab).
    _GATES = ("forget", "input", "output", "candidate")

    def __init__(self, input_size, hidden_size, output_size, key):
        self.input_size = input_size
        self.hidden_size = hidden_size
        self.output_size = output_size
        self.hp = -(-hidden_size // _LANE) * _LANE    # lane-aligned hidden dim

        keys = jax.random.split(key, 5)
        gate_keys = {"forget": keys[0], "input": keys[1],
                     "candidate": keys[2], "output": keys[3]}

        # PyTorch per-gate Linear weight is (H, I+H), xavier-uniform, zero bias.
        wx_cols, wh_cols = [], []
        for name in self._GATES:
            w = _xavier_uniform(gate_keys[name],
                                (hidden_size, input_size + hidden_size))
            wx_cols.append(w[:, :input_size].T)        # (I, H)
            wh_cols.append(w[:, input_size:].T)        # (H, H)

        # f32 master copies (used by the pure-JAX reference).
        self.wx_cat = jnp.concatenate(wx_cols, axis=1)                 # (I, 4H)
        self.wh_cat = jnp.concatenate(wh_cols, axis=1)                 # (H, 4H)
        self.bg_cat = jnp.zeros((4 * hidden_size,), jnp.float32)
        self.wf = _xavier_uniform(keys[4], (output_size, hidden_size)).T   # (H, O)
        self.bf = jnp.zeros((output_size,), jnp.float32)

        # Lane-padded kernel copies. Zero padding keeps padded h/c lanes
        # exactly 0 (sigmoid(0)*0 propagation), so results are unchanged.
        ph = self.hp - hidden_size
        self.wx_pad = jnp.concatenate(
            [jnp.pad(c, ((0, 0), (0, ph))) for c in wx_cols], axis=1)        # (I, 4Hp) f32
        self.wh_pad = jnp.concatenate(
            [jnp.pad(c, ((0, ph), (0, ph))) for c in wh_cols], axis=1
        ).astype(jnp.bfloat16)                                               # (Hp, 4Hp) bf16
        self.bg_pad = jnp.zeros((4 * self.hp,), jnp.float32)
        self.wf_pad = jnp.pad(self.wf, ((0, ph), (0, 0)))                    # (Hp, O) f32

    def __call__(self, x):
        """x: [B, S, I] or [B, I] (float32). Returns [B, S, O] or [B, O]."""
        squeeze_seq = False
        if x.ndim == 2:
            x = x[:, None, :]
            squeeze_seq = True
        elif x.ndim != 3:
            raise ValueError(f"Expected 2 or 3 dims, got {x.ndim}")

        B, S, _ = x.shape
        Hp = self.hp
        hpx = lax.Precision.HIGHEST

        # (1) Input projection + gate bias hoisted out of the recurrence and
        #     produced directly in time-major layout (no extra transpose pass).
        g = jnp.einsum("bsi,ig->sbg", x.astype(jnp.float32), self.wx_pad,
                       precision=hpx) + self.bg_pad                    # (S, B, 4Hp) f32

        # (2) Static tiling re-derived from the chip's VMEM capacity.
        budget = int(_vmem_capacity_bytes() * 0.75)
        tb, Bp = _pick_batch_tile(B)
        tc, Sp = _pick_time_chunk(S, tb, Hp, budget)
        vmem_limit = _vmem_limit_bytes(tc, tb, Hp)

        # bf16 gate stream halves HBM<->VMEM DMA; padded rows/steps are
        # row-independent junk that is sliced off afterwards.
        g = jnp.pad(g.astype(jnp.bfloat16), ((0, Sp - S), (0, Bp - B), (0, 0)))

        h_all = _lstm_recurrence(g, self.wh_pad, hidden=Hp, t_chunk=tc, tb=tb,
                                 vmem_limit=vmem_limit)                # (Sp, Bp, Hp) bf16

        # (3) Final linear applied BEFORE transposing back, so the transpose
        #     touches the small (S, B, O) tensor rather than (S, B, H).
        out = jnp.einsum("sbh,ho->sbo", h_all[:S, :B].astype(jnp.float32),
                         self.wf_pad, precision=hpx) + self.bf
        out = jnp.transpose(out, (1, 0, 2))                            # (B, S, O)

        if squeeze_seq or S == 1:
            return out[:, 0, :]
        return out


def _reference_lstm(model, x):
    """Pure-JAX reference matching the PyTorch forward (f32, per-step math)."""
    if x.ndim == 2:
        x = x[:, None, :]
    B, S, _ = x.shape
    H = model.hidden_size
    hpx = lax.Precision.HIGHEST
    h = jnp.zeros((B, H), jnp.float32)
    c = jnp.zeros((B, H), jnp.float32)
    outs = []
    for t in range(S):
        g = (jnp.dot(x[:, t, :], model.wx_cat, precision=hpx)
             + jnp.dot(h, model.wh_cat, precision=hpx) + model.bg_cat)
        f = jax.nn.sigmoid(g[:, :H])
        i = jax.nn.sigmoid(g[:, H:2 * H])
        o = jax.nn.sigmoid(g[:, 2 * H:3 * H])
        cand = jnp.tanh(g[:, 3 * H:])
        c = f * c + i * cand
        h = o * jnp.tanh(c)
        outs.append(jnp.dot(h, model.wf, precision=hpx) + model.bf)
    out = jnp.stack(outs, axis=1)
    if S == 1:
        return out[:, 0, :]
    return out


if __name__ == "__main__":
    key = jax.random.PRNGKey(0)
    k_param, k_x = jax.random.split(key)

    batch, seq_len = 2, 8
    input_size, hidden_size, output_size = 16, 32, 8

    model = OwnLSTMPallas(input_size, hidden_size, output_size, k_param)
    x = jax.random.normal(k_x, (batch, seq_len, input_size), jnp.float32)

    out = jax.block_until_ready(model(x))
    ref = _reference_lstm(model, x)
    assert out.shape == (batch, seq_len, output_size)
    # bf16 MXU operands / bf16 HBM streams (per perf review) -> tolerance is
    # looser than the all-f32 variant; accumulation stays f32 so drift is small.
    assert jnp.allclose(out, ref, atol=3e-2, rtol=3e-2), (
        f"mismatch vs reference (3-D): max abs diff {jnp.max(jnp.abs(out - ref))}")

    # 2-D input path ([B, I] -> [B, O]), matching the PyTorch module.
    x2 = jax.random.normal(jax.random.PRNGKey(1), (batch, input_size), jnp.float32)
    out2 = jax.block_until_ready(model(x2))
    ref2 = _reference_lstm(model, x2)
    assert out2.shape == (batch, output_size)
    assert jnp.allclose(out2, ref2, atol=3e-2, rtol=3e-2), (
        f"mismatch vs reference (2-D): max abs diff {jnp.max(jnp.abs(out2 - ref2))}")

    print("KERNEL_OK")
</pallas_src>

<mosaic_0001>
module attributes {stable_mosaic.version = 11 : i64} {
  func.func @_lstm_kernel(%arg0: i32, %arg1: i32, %arg2: memref<8x16x512xbf16, #tpu.memory_space<vmem>>, %arg3: memref<128x512xbf16, #tpu.memory_space<any>>, %arg4: memref<8x16x128xbf16, #tpu.memory_space<vmem>>, %arg5: memref<128x512xbf16, #tpu.memory_space<vmem>>, %arg6: memref<16x128xf32, #tpu.memory_space<vmem>>, %arg7: memref<16x128xf32, #tpu.memory_space<vmem>>, %arg8: memref<!tpu.dma_semaphore, #tpu.memory_space<semaphore_mem>>) attributes {dimension_semantics = [#tpu.dimension_semantics<parallel>, #tpu.dimension_semantics<arbitrary>], iteration_bounds = array<i64: 1, 1>, scalar_prefetch = 0 : i64, scratch_operands = 4 : i64, tpu.core_type = #tpu.core_type<tc>, window_params = [{transform_indices = @transform_0, window_bounds = array<i64: 8, 16, 512>}, {}, {transform_indices = @transform_2, window_bounds = array<i64: 8, 16, 128>}]} {
    %c0_i32 = arith.constant 0 : i32
    %0 = arith.cmpi eq, %arg1, %c0_i32 : i32
    %1 = arith.extui %0 : i1 to i32
    %c0_i32_0 = arith.constant 0 : i32
    %2 = arith.cmpi ne, %1, %c0_i32_0 : i32
    scf.if %2 {
      %cst_74 = arith.constant 0.000000e+00 : f32
      %240 = vector.broadcast %cst_74 : f32 to vector<16x128xf32>
      %c0_75 = arith.constant 0 : index
      %c0_76 = arith.constant 0 : index
      %241 = vector.load %arg6[%c0_75, %c0_76] : memref<16x128xf32, #tpu.memory_space<vmem>>, vector<16x128xf32>
      tpu.vector_store %arg6[%c0_75, %c0_76], %240 {strides = array<i32>} : memref<16x128xf32, #tpu.memory_space<vmem>>, vector<16x128xf32>,
      %cst_77 = arith.constant 0.000000e+00 : f32
      %242 = vector.broadcast %cst_77 : f32 to vector<16x128xf32>
      %c0_78 = arith.constant 0 : index
      %c0_79 = arith.constant 0 : index
      %243 = vector.load %arg7[%c0_78, %c0_79] : memref<16x128xf32, #tpu.memory_space<vmem>>, vector<16x128xf32>
      tpu.vector_store %arg7[%c0_78, %c0_79], %242 {strides = array<i32>} : memref<16x128xf32, #tpu.memory_space<vmem>>, vector<16x128xf32>,
      tpu.enqueue_dma source(%arg3 : memref<128x512xbf16, #tpu.memory_space<any>>) target(%arg5 : memref<128x512xbf16, #tpu.memory_space<vmem>>) target_semaphore(%arg8 : memref<!tpu.dma_semaphore, #tpu.memory_space<semaphore_mem>>)
      tpu.wait_dma2 semaphore(%arg8 : memref<!tpu.dma_semaphore, #tpu.memory_space<semaphore_mem>>) src(%arg3 : memref<128x512xbf16, #tpu.memory_space<any>>) dst(%arg5 : memref<128x512xbf16, #tpu.memory_space<vmem>>)
    } else {
    }
    %c0 = arith.constant 0 : index
    %c0_1 = arith.constant 0 : index
    %3 = vector.load %arg5[%c0, %c0_1] : memref<128x512xbf16, #tpu.memory_space<vmem>>, vector<128x512xbf16>
    %c0_2 = arith.constant 0 : index
    %c0_3 = arith.constant 0 : index
    %4 = vector.load %arg6[%c0_2, %c0_3] : memref<16x128xf32, #tpu.memory_space<vmem>>, vector<16x128xf32>
    %c0_4 = arith.constant 0 : index
    %c0_5 = arith.constant 0 : index
    %5 = vector.load %arg7[%c0_4, %c0_5] : memref<16x128xf32, #tpu.memory_space<vmem>>, vector<16x128xf32>
    %c0_i32_6 = arith.constant 0 : i32
    %6 = arith.index_cast %c0_i32_6 : i32 to index
    %c0_7 = arith.constant 0 : index
    %c0_8 = arith.constant 0 : index
    %7 = vector.load %arg2[%6, %c0_7, %c0_8] : memref<8x16x512xbf16, #tpu.memory_space<vmem>>, vector<1x16x512xbf16>
    %8 = vector.shape_cast %7 : vector<1x16x512xbf16> to vector<16x512xbf16>
    %9 = arith.extf %8 : vector<16x512xbf16> to vector<16x512xf32>
    %10 = arith.truncf %4 : vector<16x128xf32> to vector<16x128xbf16>
    %cst = arith.constant dense<0.000000e+00> : vector<16x512xf32>
    %11 = tpu.matmul %10, %3, %cst {dimension_numbers = #tpu.dot_dimension_numbers<[1], [0], [0], [1], [0, 0, 1, 1], [], []>} : vector<16x128xbf16>, vector<128x512xbf16>, vector<16x512xf32> -> vector<16x512xf32>
    %12 = arith.addf %9, %11 : vector<16x512xf32>
    %13 = vector.extract_strided_slice %12 {offsets = [0, 0], sizes = [16, 384], strides = [1, 1]} : vector<16x512xf32> to vector<16x384xf32>
    %cst_9 = arith.constant 5.000000e-01 : f32
    %14 = vector.broadcast %cst_9 : f32 to vector<16x384xf32>
    %15 = arith.mulf %14, %13 : vector<16x384xf32>
    %16 = math.tanh %15 : vector<16x384xf32>
    %cst_10 = arith.constant 5.000000e-01 : f32
    %17 = vector.broadcast %cst_10 : f32 to vector<16x384xf32>
    %18 = arith.mulf %17, %16 : vector<16x384xf32>
    %cst_11 = arith.constant 5.000000e-01 : f32
    %19 = vector.broadcast %cst_11 : f32 to vector<16x384xf32>
    %20 = arith.addf %18, %19 : vector<16x384xf32>
    %21 = vector.extract_strided_slice %12 {offsets = [0, 384], sizes = [16, 128], strides = [1, 1]} : vector<16x512xf32> to vector<16x128xf32>
    %22 = math.tanh %21 : vector<16x128xf32>
    %23 = vector.extract_strided_slice %20 {offsets = [0, 0], sizes = [16, 128], strides = [1, 1]} : vector<16x384xf32> to vector<16x128xf32>
    %24 = vector.extract_strided_slice %20 {offsets = [0, 128], sizes = [16, 128], strides = [1, 1]} : vector<16x384xf32> to vector<16x128xf32>
    %25 = vector.extract_strided_slice %20 {offsets = [0, 256], sizes = [16, 128], strides = [1, 1]} : vector<16x384xf32> to vector<16x128xf32>
    %26 = arith.mulf %23, %5 : vector<16x128xf32>
    %27 = arith.mulf %24, %22 : vector<16x128xf32>
    %28 = arith.addf %26, %27 : vector<16x128xf32>
    %29 = math.tanh %28 : vector<16x128xf32>
    %30 = arith.mulf %25, %29 : vector<16x128xf32>
    %31 = vector.shape_cast %30 : vector<16x128xf32> to vector<1x16x128xf32>
    %32 = arith.truncf %31 : vector<1x16x128xf32> to vector<1x16x128xbf16>
    %33 = arith.index_cast %c0_i32_6 : i32 to index
    %c0_12 = arith.constant 0 : index
    %c0_13 = arith.constant 0 : index
    %34 = vector.load %arg4[%33, %c0_12, %c0_13] : memref<8x16x128xbf16, #tpu.memory_space<vmem>>, vector<1x16x128xbf16>
    tpu.vector_store %arg4[%33, %c0_12, %c0_13], %32 {strides = array<i32>} : memref<8x16x128xbf16, #tpu.memory_space<vmem>>, vector<1x16x128xbf16>,
    %c1_i32 = arith.constant 1 : i32
    %35 = arith.index_cast %c1_i32 : i32 to index
    %c0_14 = arith.constant 0 : index
    %c0_15 = arith.constant 0 : index
    %36 = vector.load %arg2[%35, %c0_14, %c0_15] : memref<8x16x512xbf16, #tpu.memory_space<vmem>>, vector<1x16x512xbf16>
    %37 = vector.shape_cast %36 : vector<1x16x512xbf16> to vector<16x512xbf16>
    %38 = arith.extf %37 : vector<16x512xbf16> to vector<16x512xf32>
    %39 = arith.truncf %30 : vector<16x128xf32> to vector<16x128xbf16>
    %cst_16 = arith.constant dense<0.000000e+00> : vector<16x512xf32>
    %40 = tpu.matmul %39, %3, %cst_16 {dimension_numbers = #tpu.dot_dimension_numbers<[1], [0], [0], [1], [0, 0, 1, 1], [], []>} : vector<16x128xbf16>, vector<128x512xbf16>, vector<16x512xf32> -> vector<16x512xf32>
    %41 = arith.addf %38, %40 : vector<16x512xf32>
    %42 = vector.extract_strided_slice %41 {offsets = [0, 0], sizes = [16, 384], strides = [1, 1]} : vector<16x512xf32> to vector<16x384xf32>
    %cst_17 = arith.constant 5.000000e-01 : f32
    %43 = vector.broadcast %cst_17 : f32 to vector<16x384xf32>
    %44 = arith.mulf %43, %42 : vector<16x384xf32>
    %45 = math.tanh %44 : vector<16x384xf32>
    %cst_18 = arith.constant 5.000000e-01 : f32
    %46 = vector.broadcast %cst_18 : f32 to vector<16x384xf32>
    %47 = arith.mulf %46, %45 : vector<16x384xf32>
    %cst_19 = arith.constant 5.000000e-01 : f32
    %48 = vector.broadcast %cst_19 : f32 to vector<16x384xf32>
    %49 = arith.addf %47, %48 : vector<16x384xf32>
    %50 = vector.extract_strided_slice %41 {offsets = [0, 384], sizes = [16, 128], strides = [1, 1]} : vector<16x512xf32> to vector<16x128xf32>
    %51 = math.tanh %50 : vector<16x128xf32>
    %52 = vector.extract_strided_slice %49 {offsets = [0, 0], sizes = [16, 128], strides = [1, 1]} : vector<16x384xf32> to vector<16x128xf32>
    %53 = vector.extract_strided_slice %49 {offsets = [0, 128], sizes = [16, 128], strides = [1, 1]} : vector<16x384xf32> to vector<16x128xf32>
    %54 = vector.extract_strided_slice %49 {offsets = [0, 256], sizes = [16, 128], strides = [1, 1]} : vector<16x384xf32> to vector<16x128xf32>
    %55 = arith.mulf %52, %28 : vector<16x128xf32>
    %56 = arith.mulf %53, %51 : vector<16x128xf32>
    %57 = arith.addf %55, %56 : vector<16x128xf32>
    %58 = math.tanh %57 : vector<16x128xf32>
    %59 = arith.mulf %54, %58 : vector<16x128xf32>
    %60 = vector.shape_cast %59 : vector<16x128xf32> to vector<1x16x128xf32>
    %61 = arith.truncf %60 : vector<1x16x128xf32> to vector<1x16x128xbf16>
    %62 = arith.index_cast %c1_i32 : i32 to index
    %c0_20 = arith.constant 0 : index
    %c0_21 = arith.constant 0 : index
    %63 = vector.load %arg4[%62, %c0_20, %c0_21] : memref<8x16x128xbf16, #tpu.memory_space<vmem>>, vector<1x16x128xbf16>
    tpu.vector_store %arg4[%62, %c0_20, %c0_21], %61 {strides = array<i32>} : memref<8x16x128xbf16, #tpu.memory_space<vmem>>, vector<1x16x128xbf16>,
    %c2_i32 = arith.constant 2 : i32
    %64 = arith.index_cast %c2_i32 : i32 to index
    %c0_22 = arith.constant 0 : index
    %c0_23 = arith.constant 0 : index
    %65 = vector.load %arg2[%64, %c0_22, %c0_23] : memref<8x16x512xbf16, #tpu.memory_space<vmem>>, vector<1x16x512xbf16>
    %66 = vector.shape_cast %65 : vector<1x16x512xbf16> to vector<16x512xbf16>
    %67 = arith.extf %66 : vector<16x512xbf16> to vector<16x512xf32>
    %68 = arith.truncf %59 : vector<16x128xf32> to vector<16x128xbf16>
    %cst_24 = arith.constant dense<0.000000e+00> : vector<16x512xf32>
    %69 = tpu.matmul %68, %3, %cst_24 {dimension_numbers = #tpu.dot_dimension_numbers<[1], [0], [0], [1], [0, 0, 1, 1], [], []>} : vector<16x128xbf16>, vector<128x512xbf16>, vector<16x512xf32> -> vector<16x512xf32>
    %70 = arith.addf %67, %69 : vector<16x512xf32>
    %71 = vector.extract_strided_slice %70 {offsets = [0, 0], sizes = [16, 384], strides = [1, 1]} : vector<16x512xf32> to vector<16x384xf32>
    %cst_25 = arith.constant 5.000000e-01 : f32
    %72 = vector.broadcast %cst_25 : f32 to vector<16x384xf32>
    %73 = arith.mulf %72, %71 : vector<16x384xf32>
    %74 = math.tanh %73 : vector<16x384xf32>
    %cst_26 = arith.constant 5.000000e-01 : f32
    %75 = vector.broadcast %cst_26 : f32 to vector<16x384xf32>
    %76 = arith.mulf %75, %74 : vector<16x384xf32>
    %cst_27 = arith.constant 5.000000e-01 : f32
    %77 = vector.broadcast %cst_27 : f32 to vector<16x384xf32>
    %78 = arith.addf %76, %77 : vector<16x384xf32>
    %79 = vector.extract_strided_slice %70 {offsets = [0, 384], sizes = [16, 128], strides = [1, 1]} : vector<16x512xf32> to vector<16x128xf32>
    %80 = math.tanh %79 : vector<16x128xf32>
    %81 = vector.extract_strided_slice %78 {offsets = [0, 0], sizes = [16, 128], strides = [1, 1]} : vector<16x384xf32> to vector<16x128xf32>
    %82 = vector.extract_strided_slice %78 {offsets = [0, 128], sizes = [16, 128], strides = [1, 1]} : vector<16x384xf32> to vector<16x128xf32>
    %83 = vector.extract_strided_slice %78 {offsets = [0, 256], sizes = [16, 128], strides = [1, 1]} : vector<16x384xf32> to vector<16x128xf32>
    %84 = arith.mulf %81, %57 : vector<16x128xf32>
    %85 = arith.mulf %82, %80 : vector<16x128xf32>
    %86 = arith.addf %84, %85 : vector<16x128xf32>
    %87 = math.tanh %86 : vector<16x128xf32>
    %88 = arith.mulf %83, %87 : vector<16x128xf32>
    %89 = vector.shape_cast %88 : vector<16x128xf32> to vector<1x16x128xf32>
    %90 = arith.truncf %89 : vector<1x16x128xf32> to vector<1x16x128xbf16>
    %91 = arith.index_cast %c2_i32 : i32 to index
    %c0_28 = arith.constant 0 : index
    %c0_29 = arith.constant 0 : index
    %92 = vector.load %arg4[%91, %c0_28, %c0_29] : memref<8x16x128xbf16, #tpu.memory_space<vmem>>, vector<1x16x128xbf16>
    tpu.vector_store %arg4[%91, %c0_28, %c0_29], %90 {strides = array<i32>} : memref<8x16x128xbf16, #tpu.memory_space<vmem>>, vector<1x16x128xbf16>,
    %c3_i32 = arith.constant 3 : i32
    %93 = arith.index_cast %c3_i32 : i32 to index
    %c0_30 = arith.constant 0 : index
    %c0_31 = arith.constant 0 : index
    %94 = vector.load %arg2[%93, %c0_30, %c0_31] : memref<8x16x512xbf16, #tpu.memory_space<vmem>>, vector<1x16x512xbf16>
    %95 = vector.shape_cast %94 : vector<1x16x512xbf16> to vector<16x512xbf16>
    %96 = arith.extf %95 : vector<16x512xbf16> to vector<16x512xf32>
    %97 = arith.truncf %88 : vector<16x128xf32> to vector<16x128xbf16>
    %cst_32 = arith.constant dense<0.000000e+00> : vector<16x512xf32>
    %98 = tpu.matmul %97, %3, %cst_32 {dimension_numbers = #tpu.dot_dimension_numbers<[1], [0], [0], [1], [0, 0, 1, 1], [], []>} : vector<16x128xbf16>, vector<128x512xbf16>, vector<16x512xf32> -> vector<16x512xf32>
    %99 = arith.addf %96, %98 : vector<16x512xf32>
    %100 = vector.extract_strided_slice %99 {offsets = [0, 0], sizes = [16, 384], strides = [1, 1]} : vector<16x512xf32> to vector<16x384xf32>
    %cst_33 = arith.constant 5.000000e-01 : f32
    %101 = vector.broadcast %cst_33 : f32 to vector<16x384xf32>
    %102 = arith.mulf %101, %100 : vector<16x384xf32>
    %103 = math.tanh %102 : vector<16x384xf32>
    %cst_34 = arith.constant 5.000000e-01 : f32
    %104 = vector.broadcast %cst_34 : f32 to vector<16x384xf32>
    %105 = arith.mulf %104, %103 : vector<16x384xf32>
    %cst_35 = arith.constant 5.000000e-01 : f32
    %106 = vector.broadcast %cst_35 : f32 to vector<16x384xf32>
    %107 = arith.addf %105, %106 : vector<16x384xf32>
    %108 = vector.extract_strided_slice %99 {offsets = [0, 384], sizes = [16, 128], strides = [1, 1]} : vector<16x512xf32> to vector<16x128xf32>
    %109 = math.tanh %108 : vector<16x128xf32>
    %110 = vector.extract_strided_slice %107 {offsets = [0, 0], sizes = [16, 128], strides = [1, 1]} : vector<16x384xf32> to vector<16x128xf32>
    %111 = vector.extract_strided_slice %107 {offsets = [0, 128], sizes = [16, 128], strides = [1, 1]} : vector<16x384xf32> to vector<16x128xf32>
    %112 = vector.extract_strided_slice %107 {offsets = [0, 256], sizes = [16, 128], strides = [1, 1]} : vector<16x384xf32> to vector<16x128xf32>
    %113 = arith.mulf %110, %86 : vector<16x128xf32>
    %114 = arith.mulf %111, %109 : vector<16x128xf32>
    %115 = arith.addf %113, %114 : vector<16x128xf32>
    %116 = math.tanh %115 : vector<16x128xf32>
    %117 = arith.mulf %112, %116 : vector<16x128xf32>
    %118 = vector.shape_cast %117 : vector<16x128xf32> to vector<1x16x128xf32>
    %119 = arith.truncf %118 : vector<1x16x128xf32> to vector<1x16x128xbf16>
    %120 = arith.index_cast %c3_i32 : i32 to index
    %c0_36 = arith.constant 0 : index
    %c0_37 = arith.constant 0 : index
    %121 = vector.load %arg4[%120, %c0_36, %c0_37] : memref<8x16x128xbf16, #tpu.memory_space<vmem>>, vector<1x16x128xbf16>
    tpu.vector_store %arg4[%120, %c0_36, %c0_37], %119 {strides = array<i32>} : memref<8x16x128xbf16, #tpu.memory_space<vmem>>, vector<1x16x128xbf16>,
    %c4_i32 = arith.constant 4 : i32
    %122 = arith.index_cast %c4_i32 : i32 to index
    %c0_38 = arith.constant 0 : index
    %c0_39 = arith.constant 0 : index
    %123 = vector.load %arg2[%122, %c0_38, %c0_39] : memref<8x16x512xbf16, #tpu.memory_space<vmem>>, vector<1x16x512xbf16>
    %124 = vector.shape_cast %123 : vector<1x16x512xbf16> to vector<16x512xbf16>
    %125 = arith.extf %124 : vector<16x512xbf16> to vector<16x512xf32>
    %126 = arith.truncf %117 : vector<16x128xf32> to vector<16x128xbf16>
    %cst_40 = arith.constant dense<0.000000e+00> : vector<16x512xf32>
    %127 = tpu.matmul %126, %3, %cst_40 {dimension_numbers = #tpu.dot_dimension_numbers<[1], [0], [0], [1], [0, 0, 1, 1], [], []>} : vector<16x128xbf16>, vector<128x512xbf16>, vector<16x512xf32> -> vector<16x512xf32>
    %128 = arith.addf %125, %127 : vector<16x512xf32>
    %129 = vector.extract_strided_slice %128 {offsets = [0, 0], sizes = [16, 384], strides = [1, 1]} : vector<16x512xf32> to vector<16x384xf32>
    %cst_41 = arith.constant 5.000000e-01 : f32
    %130 = vector.broadcast %cst_41 : f32 to vector<16x384xf32>
    %131 = arith.mulf %130, %129 : vector<16x384xf32>
    %132 = math.tanh %131 : vector<16x384xf32>
    %cst_42 = arith.constant 5.000000e-01 : f32
    %133 = vector.broadcast %cst_42 : f32 to vector<16x384xf32>
    %134 = arith.mulf %133, %132 : vector<16x384xf32>
    %cst_43 = arith.constant 5.000000e-01 : f32
    %135 = vector.broadcast %cst_43 : f32 to vector<16x384xf32>
    %136 = arith.addf %134, %135 : vector<16x384xf32>
    %137 = vector.extract_strided_slice %128 {offsets = [0, 384], sizes = [16, 128], strides = [1, 1]} : vector<16x512xf32> to vector<16x128xf32>
    %138 = math.tanh %137 : vector<16x128xf32>
    %139 = vector.extract_strided_slice %136 {offsets = [0, 0], sizes = [16, 128], strides = [1, 1]} : vector<16x384xf32> to vector<16x128xf32>
    %140 = vector.extract_strided_slice %136 {offsets = [0, 128], sizes = [16, 128], strides = [1, 1]} : vector<16x384xf32> to vector<16x128xf32>
    %141 = vector.extract_strided_slice %136 {offsets = [0, 256], sizes = [16, 128], strides = [1, 1]} : vector<16x384xf32> to vector<16x128xf32>
    %142 = arith.mulf %139, %115 : vector<16x128xf32>
    %143 = arith.mulf %140, %138 : vector<16x128xf32>
    %144 = arith.addf %142, %143 : vector<16x128xf32>
    %145 = math.tanh %144 : vector<16x128xf32>
    %146 = arith.mulf %141, %145 : vector<16x128xf32>
    %147 = vector.shape_cast %146 : vector<16x128xf32> to vector<1x16x128xf32>
    %148 = arith.truncf %147 : vector<1x16x128xf32> to vector<1x16x128xbf16>
    %149 = arith.index_cast %c4_i32 : i32 to index
    %c0_44 = arith.constant 0 : index
    %c0_45 = arith.constant 0 : index
    %150 = vector.load %arg4[%149, %c0_44, %c0_45] : memref<8x16x128xbf16, #tpu.memory_space<vmem>>, vector<1x16x128xbf16>
    tpu.vector_store %arg4[%149, %c0_44, %c0_45], %148 {strides = array<i32>} : memref<8x16x128xbf16, #tpu.memory_space<vmem>>, vector<1x16x128xbf16>,
    %c5_i32 = arith.constant 5 : i32
    %151 = arith.index_cast %c5_i32 : i32 to index
    %c0_46 = arith.constant 0 : index
    %c0_47 = arith.constant 0 : index
    %152 = vector.load %arg2[%151, %c0_46, %c0_47] : memref<8x16x512xbf16, #tpu.memory_space<vmem>>, vector<1x16x512xbf16>
    %153 = vector.shape_cast %152 : vector<1x16x512xbf16> to vector<16x512xbf16>
    %154 = arith.extf %153 : vector<16x512xbf16> to vector<16x512xf32>
    %155 = arith.truncf %146 : vector<16x128xf32> to vector<16x128xbf16>
    %cst_48 = arith.constant dense<0.000000e+00> : vector<16x512xf32>
    %156 = tpu.matmul %155, %3, %cst_48 {dimension_numbers = #tpu.dot_dimension_numbers<[1], [0], [0], [1], [0, 0, 1, 1], [], []>} : vector<16x128xbf16>, vector<128x512xbf16>, vector<16x512xf32> -> vector<16x512xf32>
    %157 = arith.addf %154, %156 : vector<16x512xf32>
    %158 = vector.extract_strided_slice %157 {offsets = [0, 0], sizes = [16, 384], strides = [1, 1]} : vector<16x512xf32> to vector<16x384xf32>
    %cst_49 = arith.constant 5.000000e-01 : f32
    %159 = vector.broadcast %cst_49 : f32 to vector<16x384xf32>
    %160 = arith.mulf %159, %158 : vector<16x384xf32>
    %161 = math.tanh %160 : vector<16x384xf32>
    %cst_50 = arith.constant 5.000000e-01 : f32
    %162 = vector.broadcast %cst_50 : f32 to vector<16x384xf32>
    %163 = arith.mulf %162, %161 : vector<16x384xf32>
    %cst_51 = arith.constant 5.000000e-01 : f32
    %164 = vector.broadcast %cst_51 : f32 to vector<16x384xf32>
    %165 = arith.addf %163, %164 : vector<16x384xf32>
    %166 = vector.extract_strided_slice %157 {offsets = [0, 384], sizes = [16, 128], strides = [1, 1]} : vector<16x512xf32> to vector<16x128xf32>
    %167 = math.tanh %166 : vector<16x128xf32>
    %168 = vector.extract_strided_slice %165 {offsets = [0, 0], sizes = [16, 128], strides = [1, 1]} : vector<16x384xf32> to vector<16x128xf32>
    %169 = vector.extract_strided_slice %165 {offsets = [0, 128], sizes = [16, 128], strides = [1, 1]} : vector<16x384xf32> to vector<16x128xf32>
    %170 = vector.extract_strided_slice %165 {offsets = [0, 256], sizes = [16, 128], strides = [1, 1]} : vector<16x384xf32> to vector<16x128xf32>
    %171 = arith.mulf %168, %144 : vector<16x128xf32>
    %172 = arith.mulf %169, %167 : vector<16x128xf32>
    %173 = arith.addf %171, %172 : vector<16x128xf32>
    %174 = math.tanh %173 : vector<16x128xf32>
    %175 = arith.mulf %170, %174 : vector<16x128xf32>
    %176 = vector.shape_cast %175 : vector<16x128xf32> to vector<1x16x128xf32>
    %177 = arith.truncf %176 : vector<1x16x128xf32> to vector<1x16x128xbf16>
    %178 = arith.index_cast %c5_i32 : i32 to index
    %c0_52 = arith.constant 0 : index
    %c0_53 = arith.constant 0 : index
    %179 = vector.load %arg4[%178, %c0_52, %c0_53] : memref<8x16x128xbf16, #tpu.memory_space<vmem>>, vector<1x16x128xbf16>
    tpu.vector_store %arg4[%178, %c0_52, %c0_53], %177 {strides = array<i32>} : memref<8x16x128xbf16, #tpu.memory_space<vmem>>, vector<1x16x128xbf16>,
    %c6_i32 = arith.constant 6 : i32
    %180 = arith.index_cast %c6_i32 : i32 to index
    %c0_54 = arith.constant 0 : index
    %c0_55 = arith.constant 0 : index
    %181 = vector.load %arg2[%180, %c0_54, %c0_55] : memref<8x16x512xbf16, #tpu.memory_space<vmem>>, vector<1x16x512xbf16>
    %182 = vector.shape_cast %181 : vector<1x16x512xbf16> to vector<16x512xbf16>
    %183 = arith.extf %182 : vector<16x512xbf16> to vector<16x512xf32>
    %184 = arith.truncf %175 : vector<16x128xf32> to vector<16x128xbf16>
    %cst_56 = arith.constant dense<0.000000e+00> : vector<16x512xf32>
    %185 = tpu.matmul %184, %3, %cst_56 {dimension_numbers = #tpu.dot_dimension_numbers<[1], [0], [0], [1], [0, 0, 1, 1], [], []>} : vector<16x128xbf16>, vector<128x512xbf16>, vector<16x512xf32> -> vector<16x512xf32>
    %186 = arith.addf %183, %185 : vector<16x512xf32>
    %187 = vector.extract_strided_slice %186 {offsets = [0, 0], sizes = [16, 384], strides = [1, 1]} : vector<16x512xf32> to vector<16x384xf32>
    %cst_57 = arith.constant 5.000000e-01 : f32
    %188 = vector.broadcast %cst_57 : f32 to vector<16x384xf32>
    %189 = arith.mulf %188, %187 : vector<16x384xf32>
    %190 = math.tanh %189 : vector<16x384xf32>
    %cst_58 = arith.constant 5.000000e-01 : f32
    %191 = vector.broadcast %cst_58 : f32 to vector<16x384xf32>
    %192 = arith.mulf %191, %190 : vector<16x384xf32>
    %cst_59 = arith.constant 5.000000e-01 : f32
    %193 = vector.broadcast %cst_59 : f32 to vector<16x384xf32>
    %194 = arith.addf %192, %193 : vector<16x384xf32>
    %195 = vector.extract_strided_slice %186 {offsets = [0, 384], sizes = [16, 128], strides = [1, 1]} : vector<16x512xf32> to vector<16x128xf32>
    %196 = math.tanh %195 : vector<16x128xf32>
    %197 = vector.extract_strided_slice %194 {offsets = [0, 0], sizes = [16, 128], strides = [1, 1]} : vector<16x384xf32> to vector<16x128xf32>
    %198 = vector.extract_strided_slice %194 {offsets = [0, 128], sizes = [16, 128], strides = [1, 1]} : vector<16x384xf32> to vector<16x128xf32>
    %199 = vector.extract_strided_slice %194 {offsets = [0, 256], sizes = [16, 128], strides = [1, 1]} : vector<16x384xf32> to vector<16x128xf32>
    %200 = arith.mulf %197, %173 : vector<16x128xf32>
    %201 = arith.mulf %198, %196 : vector<16x128xf32>
    %202 = arith.addf %200, %201 : vector<16x128xf32>
    %203 = math.tanh %202 : vector<16x128xf32>
    %204 = arith.mulf %199, %203 : vector<16x128xf32>
    %205 = vector.shape_cast %204 : vector<16x128xf32> to vector<1x16x128xf32>
    %206 = arith.truncf %205 : vector<1x16x128xf32> to vector<1x16x128xbf16>
    %207 = arith.index_cast %c6_i32 : i32 to index
    %c0_60 = arith.constant 0 : index
    %c0_61 = arith.constant 0 : index
    %208 = vector.load %arg4[%207, %c0_60, %c0_61] : memref<8x16x128xbf16, #tpu.memory_space<vmem>>, vector<1x16x128xbf16>
    tpu.vector_store %arg4[%207, %c0_60, %c0_61], %206 {strides = array<i32>} : memref<8x16x128xbf16, #tpu.memory_space<vmem>>, vector<1x16x128xbf16>,
    %c7_i32 = arith.constant 7 : i32
    %209 = arith.index_cast %c7_i32 : i32 to index
    %c0_62 = arith.constant 0 : index
    %c0_63 = arith.constant 0 : index
    %210 = vector.load %arg2[%209, %c0_62, %c0_63] : memref<8x16x512xbf16, #tpu.memory_space<vmem>>, vector<1x16x512xbf16>
    %211 = vector.shape_cast %210 : vector<1x16x512xbf16> to vector<16x512xbf16>
    %212 = arith.extf %211 : vector<16x512xbf16> to vector<16x512xf32>
    %213 = arith.truncf %204 : vector<16x128xf32> to vector<16x128xbf16>
    %cst_64 = arith.constant dense<0.000000e+00> : vector<16x512xf32>
    %214 = tpu.matmul %213, %3, %cst_64 {dimension_numbers = #tpu.dot_dimension_numbers<[1], [0], [0], [1], [0, 0, 1, 1], [], []>} : vector<16x128xbf16>, vector<128x512xbf16>, vector<16x512xf32> -> vector<16x512xf32>
    %215 = arith.addf %212, %214 : vector<16x512xf32>
    %216 = vector.extract_strided_slice %215 {offsets = [0, 0], sizes = [16, 384], strides = [1, 1]} : vector<16x512xf32> to vector<16x384xf32>
    %cst_65 = arith.constant 5.000000e-01 : f32
    %217 = vector.broadcast %cst_65 : f32 to vector<16x384xf32>
    %218 = arith.mulf %217, %216 : vector<16x384xf32>
    %219 = math.tanh %218 : vector<16x384xf32>
    %cst_66 = arith.constant 5.000000e-01 : f32
    %220 = vector.broadcast %cst_66 : f32 to vector<16x384xf32>
    %221 = arith.mulf %220, %219 : vector<16x384xf32>
    %cst_67 = arith.constant 5.000000e-01 : f32
    %222 = vector.broadcast %cst_67 : f32 to vector<16x384xf32>
    %223 = arith.addf %221, %222 : vector<16x384xf32>
    %224 = vector.extract_strided_slice %215 {offsets = [0, 384], sizes = [16, 128], strides = [1, 1]} : vector<16x512xf32> to vector<16x128xf32>
    %225 = math.tanh %224 : vector<16x128xf32>
    %226 = vector.extract_strided_slice %223 {offsets = [0, 0], sizes = [16, 128], strides = [1, 1]} : vector<16x384xf32> to vector<16x128xf32>
    %227 = vector.extract_strided_slice %223 {offsets = [0, 128], sizes = [16, 128], strides = [1, 1]} : vector<16x384xf32> to vector<16x128xf32>
    %228 = vector.extract_strided_slice %223 {offsets = [0, 256], sizes = [16, 128], strides = [1, 1]} : vector<16x384xf32> to vector<16x128xf32>
    %229 = arith.mulf %226, %202 : vector<16x128xf32>
    %230 = arith.mulf %227, %225 : vector<16x128xf32>
    %231 = arith.addf %229, %230 : vector<16x128xf32>
    %232 = math.tanh %231 : vector<16x128xf32>
    %233 = arith.mulf %228, %232 : vector<16x128xf32>
    %234 = vector.shape_cast %233 : vector<16x128xf32> to vector<1x16x128xf32>
    %235 = arith.truncf %234 : vector<1x16x128xf32> to vector<1x16x128xbf16>
    %236 = arith.index_cast %c7_i32 : i32 to index
    %c0_68 = arith.constant 0 : index
    %c0_69 = arith.constant 0 : index
    %237 = vector.load %arg4[%236, %c0_68, %c0_69] : memref<8x16x128xbf16, #tpu.memory_space<vmem>>, vector<1x16x128xbf16>
    tpu.vector_store %arg4[%236, %c0_68, %c0_69], %235 {strides = array<i32>} : memref<8x16x128xbf16, #tpu.memory_space<vmem>>, vector<1x16x128xbf16>,
    %c8_i32 = arith.constant 8 : i32
    %c0_70 = arith.constant 0 : index
    %c0_71 = arith.constant 0 : index
    %238 = vector.load %arg6[%c0_70, %c0_71] : memref<16x128xf32, #tpu.memory_space<vmem>>, vector<16x128xf32>
    tpu.vector_store %arg6[%c0_70, %c0_71], %233 {strides = array<i32>} : memref<16x128xf32, #tpu.memory_space<vmem>>, vector<16x128xf32>,
    %c0_72 = arith.constant 0 : index
    %c0_73 = arith.constant 0 : index
    %239 = vector.load %arg7[%c0_72, %c0_73] : memref<16x128xf32, #tpu.memory_space<vmem>>, vector<16x128xf32>
    tpu.vector_store %arg7[%c0_72, %c0_73], %231 {strides = array<i32>} : memref<16x128xf32, #tpu.memory_space<vmem>>, vector<16x128xf32>,
    return
  }
  func.func @transform_0(%arg0: i32, %arg1: i32) -> (i32, i32, i32) {
    %c0_i32 = arith.constant 0 : i32
    %c0_i32_0 = arith.constant 0 : i32
    return %arg1, %arg0, %c0_i32 : i32, i32, i32
  }
  func.func @transform_2(%arg0: i32, %arg1: i32) -> (i32, i32, i32) {
    %c0_i32 = arith.constant 0 : i32
    %c0_i32_0 = arith.constant 0 : i32
    return %arg1, %arg0, %c0_i32 : i32, i32, i32
  }
}

</mosaic_0001>

<llo_original>
// kernel: _lstm_recurrence.1
$region0: #{_lstm_recurrence.1}
  #allocation0 [shape = 'u32[]', space=smem, size = 0x4, offset = 0x4, fixed_abs, tag = 'smem constant byte address 0x4 - core index']
  #allocation1 [shape = 'u32[144,128]{1,0:T(1,128)}', space=vmem, size = 0x12000, scoped, tag = 'internal scratch']
  #allocation2 [shape = 'bf16[128,512]{1,0:T(8,128)(2,1)}', space=vmem, size = 0x20000, scoped, tag = 'scratch operand']
  #allocation3 [shape = 'f32[16,128]{1,0:T(8,128)}', space=vmem, size = 0x2000, scoped, tag = 'scratch operand']
  #allocation4 [shape = 'f32[16,128]{1,0:T(8,128)}', space=vmem, size = 0x2000, scoped, tag = 'scratch operand']
  #allocation5 [shape = 's32[1]{0}', space=sflag, size = 0x4, scoped, tag = 'scratch operand']
  #allocation10 [shape = 's32[]', space=sflag, size = 0x4, offset = 0, fixed_abs, tag = 'sflag constant byte address 0x0 - dummy sync flag']
  #allocation11 [shape = 's32[]', space=sflag, size = 0x4, offset = 0, fixed_abs, tag = 'sflag constant byte address 0x0 - dummy sync flag']
  #allocation12 [shape = 'u32[]', space=smem, size = 0x4, offset = 0x44, fixed_abs, tag = 'smem constant byte address 0x44 - assertion arg 0']
  #allocation13 [shape = 'u32[]', space=smem, size = 0x4, offset = 0x48, fixed_abs, tag = 'smem constant byte address 0x48 - assertion arg 1']
  %s0 = inlined_call_operand.hbm [shape: bf16[8,16,512], index: 0, kind: input, shape index: {}]
  %s1 = inlined_call_operand.hbm [shape: bf16[128,512], index: 1, kind: input, shape index: {}]
  %s2 = inlined_call_operand.hbm [shape: bf16[8,16,128], index: 2, kind: output, shape index: {}]
  %s3 = sld [smem:[#allocation0]]
  $region26: #{_lstm_recurrence.1} parent=0
    _
  %s5 = ssub.s32 1, %s3
  %s6 = scalar_select 0, %s5, %s3
  $region1: #{_lstm_recurrence.1} parent=0
    #allocation6 [shape = 'u8[131072]{0}', space=vmem, size = 0x20000, scoped, tag = 'input window, operand 0, single buffered']
    #allocation7 [shape = 's32[1]{0}', space=sflag, size = 0x4, scoped, tag = 'scoped memory for _lstm_recurrence.1']
    #allocation8 [shape = 's32[1]{0}', space=sflag, size = 0x4, scoped, tag = 'scoped memory for _lstm_recurrence.1']
    #allocation9 [shape = 'u8[32768]{0}', space=vmem, size = 0x8000, scoped, tag = 'output window, operand 0, single buffered']
    %7 = vsyncpa [#allocation7], 0
    %8 = vsyncpa [#allocation8], 0
    // Predicated region
    $region2: #{_lstm_recurrence.1} parent=1 // pred_check
      _
    $region3: #{_lstm_recurrence.1} parent=1 // pred_check_branch
      %10 = sbr.rel (0) target = $region5
    $region4: #{_lstm_recurrence.1} parent=1 // pred_region
      %s12 = ssub.s32 4096, 4096
      %13 = vsyncadd [#allocation7], %s12
      %s14 = sshll.u32 [#allocation6], 4
      %s15 = int_to_ptr.vmem [resolvable:$true] %s14
      %20 = dma.hbm_to_vmem [thread:$0]  %s0, 4096, %s15, [#allocation7], 256, 256, 16
    $region5: #{_lstm_recurrence.1} parent=1 // pred_fallthru
      _
    // Predicated region
    $region6: #{_lstm_recurrence.1} parent=1 // pred_check
      _
    $region7: #{_lstm_recurrence.1} parent=1 // pred_check_branch
      %22 = sbr.rel (0) target = $region9
    $region8: #{_lstm_recurrence.1} parent=1 // pred_region
      %23 = dma.done [#allocation7], 4096
    $region9: #{_lstm_recurrence.1} parent=1 // pred_fallthru
      _
    %p25 = scmp.eq.s32.totalorder 0, 0
    // Predicated region
    $region10: #{_lstm_recurrence.1} parent=1 // pred_check
      %p26 = pneg %p25
    $region11: #{_lstm_recurrence.1} parent=1 // pred_check_branch
      %28 = sbr.rel (%p26) target = $region13
    $region12: #{_lstm_recurrence.1} parent=1 // pred_region
      %29 = vst [vmem:[#allocation3] sm:$0xff] 0.0
      %30 = vst [vmem:[#allocation3 + $0x8] sm:$0xff] 0.0
      %31 = vst [vmem:[#allocation4] sm:$0xff] 0.0
      %32 = vst [vmem:[#allocation4 + $0x8] sm:$0xff] 0.0
      // Predicated region
      $region14: #{_lstm_recurrence.1} parent=12 // pred_check
        _
      $region15: #{_lstm_recurrence.1} parent=12 // pred_check_branch
        %34 = sbr.rel target = $region17
      $region16: #{_lstm_recurrence.1} parent=12 // pred_region
        %35 = sst [smem:[#allocation12]] [#allocation11]
        %36 = sst [smem:[#allocation13]] [#allocation10]
      $region17: #{_lstm_recurrence.1} parent=12 // pred_fallthru
        _
      %38 = shalt.err (0)
      %s40 = sshll.u32 [#allocation2], 4
      %s41 = int_to_ptr.vmem [resolvable:$true] %s40
      %43 = dma.hbm_to_vmem [thread:$0]  %s1, 4096, %s41, [#allocation5]
      %s44 = smul.u32 4, 16
      %s45 = smul.u32 %s44, 4
      %s46 = sshll.u32 %s45, 4
      %47 = dma.done [#allocation5], %s46
    $region13: #{_lstm_recurrence.1} parent=1 // pred_fallthru
      _
    %v48 = vld [vmem:[#allocation2] sm:$0xff]
    %v49 = vld [vmem:[#allocation2 + $0x8] sm:$0xff]
    %v50 = vld [vmem:[#allocation2 + $0x10] sm:$0xff]
    %v51 = vld [vmem:[#allocation2 + $0x18] sm:$0xff]
    %v52 = vld [vmem:[#allocation2 + $0x20] sm:$0xff]
    %v53 = vld [vmem:[#allocation2 + $0x28] sm:$0xff]
    %v54 = vld [vmem:[#allocation2 + $0x30] sm:$0xff]
    %v55 = vld [vmem:[#allocation2 + $0x38] sm:$0xff]
    %v56 = vld [vmem:[#allocation2 + $0x40] sm:$0xff]
    %v57 = vld [vmem:[#allocation2 + $0x48] sm:$0xff]
    %v58 = vld [vmem:[#allocation2 + $0x50] sm:$0xff]
    %v59 = vld [vmem:[#allocation2 + $0x58] sm:$0xff]
    %v60 = vld [vmem:[#allocation2 + $0x60] sm:$0xff]
    %v61 = vld [vmem:[#allocation2 + $0x68] sm:$0xff]
    %v62 = vld [vmem:[#allocation2 + $0x70] sm:$0xff]
    %v63 = vld [vmem:[#allocation2 + $0x78] sm:$0xff]
    %v64 = vld [vmem:[#allocation2 + $0x80] sm:$0xff]
    %v65 = vld [vmem:[#allocation2 + $0x88] sm:$0xff]
    %v66 = vld [vmem:[#allocation2 + $0x90] sm:$0xff]
    %v67 = vld [vmem:[#allocation2 + $0x98] sm:$0xff]
    %v68 = vld [vmem:[#allocation2 + $0xa0] sm:$0xff]
    %v69 = vld [vmem:[#allocation2 + $0xa8] sm:$0xff]
    %v70 = vld [vmem:[#allocation2 + $0xb0] sm:$0xff]
    %v71 = vld [vmem:[#allocation2 + $0xb8] sm:$0xff]
    %v72 = vld [vmem:[#allocation2 + $0xc0] sm:$0xff]
    %v73 = vld [vmem:[#allocation2 + $0xc8] sm:$0xff]
    %v74 = vld [vmem:[#allocation2 + $0xd0] sm:$0xff]
    %v75 = vld [vmem:[#allocation2 + $0xd8] sm:$0xff]
    %v76 = vld [vmem:[#allocation2 + $0xe0] sm:$0xff]
    %v77 = vld [vmem:[#allocation2 + $0xe8] sm:$0xff]
    %v78 = vld [vmem:[#allocation2 + $0xf0] sm:$0xff]
    %v79 = vld [vmem:[#allocation2 + $0xf8] sm:$0xff]
    %v80 = vld [vmem:[#allocation3] sm:$0xff]
    %v81 = vld [vmem:[#allocation3 + $0x8] sm:$0xff]
    %v82 = vld [vmem:[#allocation4] sm:$0xff]
    %v83 = vld [vmem:[#allocation4 + $0x8] sm:$0xff]
    %v84 = vld [vmem:[#allocation6] sm:$0xff]
    %v85 = vld [vmem:[#allocation6 + $0x8] sm:$0xff]
    %v86 = vld [vmem:[#allocation6 + $0x10] sm:$0xff]
    %v87 = vld [vmem:[#allocation6 + $0x18] sm:$0xff]
    %v88 = vunpack.c.l.bf16 %v84
    %v89 = vunpack.c.h.bf16 %v84
    %v90 = vunpack.c.l.bf16 %v85
    %v91 = vunpack.c.h.bf16 %v85
    %v92 = vunpack.c.l.bf16 %v86
    %v93 = vunpack.c.h.bf16 %v86
    %v94 = vunpack.c.l.bf16 %v87
    %v95 = vunpack.c.h.bf16 %v87
    %v96 = vpack.c.bf16 %v81, %v80
    %v129 = vunpack.c.l.b16 %v48
    %v130 = vunpack.c.h.b16 %v48
    %v131 = vunpack.c.l.b16 %v49
    %v132 = vunpack.c.h.b16 %v49
    %v133 = vunpack.c.l.b16 %v50
    %v134 = vunpack.c.h.b16 %v50
    %v135 = vunpack.c.l.b16 %v51
    %v136 = vunpack.c.h.b16 %v51
    %v137 = vunpack.c.l.b16 %v52
    %v138 = vunpack.c.h.b16 %v52
    %v139 = vunpack.c.l.b16 %v53
    %v140 = vunpack.c.h.b16 %v53
    %v141 = vunpack.c.l.b16 %v54
    %v142 = vunpack.c.h.b16 %v54
    %v143 = vunpack.c.l.b16 %v55
    %v144 = vunpack.c.h.b16 %v55
    %v145 = vunpack.c.l.b16 %v56
    %v146 = vunpack.c.h.b16 %v56
    %v147 = vunpack.c.l.b16 %v57
    %v148 = vunpack.c.h.b16 %v57
    %v149 = vunpack.c.l.b16 %v58
    %v150 = vunpack.c.h.b16 %v58
    %v151 = vunpack.c.l.b16 %v59
    %v152 = vunpack.c.h.b16 %v59
    %v153 = vunpack.c.l.b16 %v60
    %v154 = vunpack.c.h.b16 %v60
    %v155 = vunpack.c.l.b16 %v61
    %v156 = vunpack.c.h.b16 %v61
    %v157 = vunpack.c.l.b16 %v62
    %v158 = vunpack.c.h.b16 %v62
    %v159 = vunpack.c.l.b16 %v63
    %v160 = vunpack.c.h.b16 %v63
    %v161 = vunpack.c.l.b16 %v64
    %v162 = vunpack.c.h.b16 %v64
    %v163 = vunpack.c.l.b16 %v65
    %v164 = vunpack.c.h.b16 %v65
    %v165 = vunpack.c.l.b16 %v66
    %v166 = vunpack.c.h.b16 %v66
    %v167 = vunpack.c.l.b16 %v67
    %v168 = vunpack.c.h.b16 %v67
    %v169 = vunpack.c.l.b16 %v68
    %v170 = vunpack.c.h.b16 %v68
    %v171 = vunpack.c.l.b16 %v69
    %v172 = vunpack.c.h.b16 %v69
    %v173 = vunpack.c.l.b16 %v70
    %v174 = vunpack.c.h.b16 %v70
    %v175 = vunpack.c.l.b16 %v71
    %v176 = vunpack.c.h.b16 %v71
    %v177 = vunpack.c.l.b16 %v72
    %v178 = vunpack.c.h.b16 %v72
    %v179 = vunpack.c.l.b16 %v73
    %v180 = vunpack.c.h.b16 %v73
    %v181 = vunpack.c.l.b16 %v74
    %v182 = vunpack.c.h.b16 %v74
    %v183 = vunpack.c.l.b16 %v75
    %v184 = vunpack.c.h.b16 %v75
    %v185 = vunpack.c.l.b16 %v76
    %v186 = vunpack.c.h.b16 %v76
    %v187 = vunpack.c.l.b16 %v77
    %v188 = vunpack.c.h.b16 %v77
    %v189 = vunpack.c.l.b16 %v78
    %v190 = vunpack.c.h.b16 %v78
    %v191 = vunpack.c.l.b16 %v79
    %v192 = vunpack.c.h.b16 %v79
    %v193 = vpack.c.b16 %v133, %v129
    %v194 = vpack.c.b16 %v134, %v130
    %v195 = vpack.c.b16 %v135, %v131
    %v196 = vpack.c.b16 %v136, %v132
    %v197 = vpack.c.b16 %v141, %v137
    %v198 = vpack.c.b16 %v142, %v138
    %v199 = vpack.c.b16 %v143, %v139
    %v200 = vpack.c.b16 %v144, %v140
    %v201 = vpack.c.b16 %v149, %v145
    %v202 = vpack.c.b16 %v150, %v146
    %v203 = vpack.c.b16 %v151, %v147
    %v204 = vpack.c.b16 %v152, %v148
    %v205 = vpack.c.b16 %v157, %v153
    %v206 = vpack.c.b16 %v158, %v154
    %v207 = vpack.c.b16 %v159, %v155
    %v208 = vpack.c.b16 %v160, %v156
    %v209 = vpack.c.b16 %v165, %v161
    %v210 = vpack.c.b16 %v166, %v162
    %v211 = vpack.c.b16 %v167, %v163
    %v212 = vpack.c.b16 %v168, %v164
    %v213 = vpack.c.b16 %v173, %v169
    %v214 = vpack.c.b16 %v174, %v170
    %v215 = vpack.c.b16 %v175, %v171
    %v216 = vpack.c.b16 %v176, %v172
    %v217 = vpack.c.b16 %v181, %v177
    %v218 = vpack.c.b16 %v182, %v178
    %v219 = vpack.c.b16 %v183, %v179
    %v220 = vpack.c.b16 %v184, %v180
    %v221 = vpack.c.b16 %v189, %v185
    %v222 = vpack.c.b16 %v190, %v186
    %v223 = vpack.c.b16 %v191, %v187
    %v224 = vpack.c.b16 %v192, %v188
    %257 = vmatprep.subr.bf16.mxu0 %v222
    %258 = vmatpush1.bf16.msra.mxu0 %v221
    %259 = vmatprep.subr.bf16.mxu0 %v218
    %260 = vmatpush1.bf16.msra.mxu0 %v217
    %261 = vmatprep.subr.bf16.mxu0 %v214
    %262 = vmatpush1.bf16.msra.mxu0 %v213
    %263 = vmatprep.subr.bf16.mxu0 %v210
    %264 = vmatpush1.bf16.msra.mxu0 %v209
    %265 = vmatprep.subr.bf16.mxu0 %v206
    %266 = vmatpush1.bf16.msra.mxu0 %v205
    %267 = vmatprep.subr.bf16.mxu0 %v202
    %268 = vmatpush1.bf16.msra.mxu0 %v201
    %269 = vmatprep.subr.bf16.mxu0 %v198
    %270 = vmatpush1.bf16.msra.mxu0 %v197
    %271 = vmatprep.subr.bf16.mxu0 %v194
    %272 = vmatpush1.bf16.msra.mxu0 %v193
    %273 = vmatprep.subr.bf16.mxu0 0
    %274 = vmatpush2.bf16.msra.mxu0 0
    %275 = vmatprep.subr.bf16.mxu0 0
    %276 = vmatpush2.bf16.msra.mxu0 0
    %277 = vmatprep.subr.bf16.mxu0 0
    %278 = vmatpush2.bf16.msra.mxu0 0
    %279 = vmatprep.subr.bf16.mxu0 0
    %280 = vmatpush2.bf16.msra.mxu0 0
    %281 = vmatprep.subr.bf16.mxu0 0
    %282 = vmatpush2.bf16.msra.mxu0 0
    %283 = vmatprep.subr.bf16.mxu0 0
    %284 = vmatpush2.bf16.msra.mxu0 0
    %285 = vmatprep.subr.bf16.mxu0 0
    %286 = vmatpush2.bf16.msra.mxu0 0
    %287 = vmatprep.subr.bf16.mxu0 0
    %288 = vmatpush2.bf16.msra.mxu0 0
    %289 = vmatprep.mubr.bf16.mxu0 0
    %290 = vmatmul.mubr.bf16.gmra.mxu0 %v96
    %v291 = vpop.f32.mrf.mxu0
    %v292 = vadd.f32 0.0, %v291
    %v293 = vpop.f32.mrf.mxu0
    %v294 = vadd.f32 0.0, %v293
    %v295 = vpop.f32.mrf.mxu0
    %v296 = vadd.f32 0.0, %v295
    %v297 = vpop.f32.mrf.mxu0
    %v298 = vadd.f32 0.0, %v297
    %299 = vdwg.mxu0
    %300 = vmatprep.subr.bf16.mxu0 %v224
    %301 = vmatpush1.bf16.msra.mxu0 %v223
    %302 = vmatprep.subr.bf16.mxu0 %v220
    %303 = vmatpush1.bf16.msra.mxu0 %v219
    %304 = vmatprep.subr.bf16.mxu0 %v216
    %305 = vmatpush1.bf16.msra.mxu0 %v215
    %306 = vmatprep.subr.bf16.mxu0 %v212
    %307 = vmatpush1.bf16.msra.mxu0 %v211
    %308 = vmatprep.subr.bf16.mxu0 %v208
    %309 = vmatpush1.bf16.msra.mxu0 %v207
    %310 = vmatprep.subr.bf16.mxu0 %v204
    %311 = vmatpush1.bf16.msra.mxu0 %v203
    %312 = vmatprep.subr.bf16.mxu0 %v200
    %313 = vmatpush1.bf16.msra.mxu0 %v199
    %314 = vmatprep.subr.bf16.mxu0 %v196
    %315 = vmatpush1.bf16.msra.mxu0 %v195
    %316 = vmatprep.subr.bf16.mxu0 0
    %317 = vmatpush2.bf16.msra.mxu0 0
    %318 = vmatprep.subr.bf16.mxu0 0
    %319 = vmatpush2.bf16.msra.mxu0 0
    %320 = vmatprep.subr.bf16.mxu0 0
    %321 = vmatpush2.bf16.msra.mxu0 0
    %322 = vmatprep.subr.bf16.mxu0 0
    %323 = vmatpush2.bf16.msra.mxu0 0
    %324 = vmatprep.subr.bf16.mxu0 0
    %325 = vmatpush2.bf16.msra.mxu0 0
    %326 = vmatprep.subr.bf16.mxu0 0
    %327 = vmatpush2.bf16.msra.mxu0 0
    %328 = vmatprep.subr.bf16.mxu0 0
    %329 = vmatpush2.bf16.msra.mxu0 0
    %330 = vmatprep.subr.bf16.mxu0 0
    %331 = vmatpush2.bf16.msra.mxu0 0
    %332 = vmatprep.mubr.bf16.mxu0 0
    %333 = vmatmul.mubr.bf16.gmra.mxu0 %v96
    %v334 = vpop.f32.mrf.mxu0
    %v335 = vadd.f32 0.0, %v334
    %v336 = vpop.f32.mrf.mxu0
    %v337 = vadd.f32 0.0, %v336
    %v338 = vpop.f32.mrf.mxu0
    %v339 = vadd.f32 0.0, %v338
    %v340 = vpop.f32.mrf.mxu0
    %v341 = vadd.f32 0.0, %v340
    %342 = vdwg.mxu0
    %v343 = vadd.f32 %v88, %v292
    %v344 = vadd.f32 %v89, %v294
    %v345 = vadd.f32 %v90, %v335
    %v346 = vadd.f32 %v91, %v337
    %v347 = vadd.f32 %v92, %v296
    %v348 = vadd.f32 %v93, %v298
    %v349 = vadd.f32 %v94, %v339
    %v350 = vadd.f32 %v95, %v341
    %v351 = vmul.f32 %v343, 0.5
    %v352 = vmul.f32 %v344, 0.5
    %v353 = vmul.f32 %v345, 0.5
    %v354 = vmul.f32 %v347, 0.5
    %v355 = vmul.f32 %v348, 0.5
    %v356 = vmul.f32 %v349, 0.5
    %v357 = vtanh.pop %v351
    %v358 = vtanh.pop %v352
    %v359 = vtanh.pop %v353
    %v360 = vtanh.pop %v354
    %v361 = vtanh.pop %v355
    %v362 = vtanh.pop %v356
    %v363 = vmul.f32 %v357, 0.5
    %v364 = vmul.f32 %v358, 0.5
    %v365 = vmul.f32 %v359, 0.5
    %v366 = vmul.f32 %v360, 0.5
    %v367 = vmul.f32 %v361, 0.5
    %v368 = vmul.f32 %v362, 0.5
    %v369 = vadd.f32 %v363, 0.5
    %v370 = vadd.f32 %v364, 0.5
    %v371 = vadd.f32 %v365, 0.5
    %v372 = vadd.f32 %v366, 0.5
    %v373 = vadd.f32 %v367, 0.5
    %v374 = vadd.f32 %v368, 0.5
    %v375 = vtanh.pop %v346
    %v376 = vtanh.pop %v350
    %v377 = vmul.f32 %v369, %v82
    %v378 = vmul.f32 %v372, %v83
    %v379 = vmul.f32 %v370, %v375
    %v380 = vmul.f32 %v373, %v376
    %v381 = vadd.f32 %v377, %v379
    %v382 = vadd.f32 %v378, %v380
    %v383 = vtanh.pop %v381
    %v384 = vtanh.pop %v382
    %v385 = vmul.f32 %v371, %v383
    %v386 = vmul.f32 %v374, %v384
    %v387 = vpack.c.bf16 %v386, %v385
    %v389 = vunpack.c.l.b16 %v387
    %v390 = vunpack.c.h.b16 %v387
    %v391 = vpack.c.b16 %v389, %v389
    %v392 = vpack.c.b16 %v390, %v390
    %395 = vst [vmem:[#allocation9] sm:$0xf] %v391
    %396 = vst [vmem:[#allocation9 + $0x4] sm:$0xf] %v392
    %s397 = scalar_lea.vmem [#allocation6], 32
    %v398 = vld [vmem:[%s397] sm:$0xff]
    %v399 = vld [vmem:[%s397 + $0x8] sm:$0xff]
    %v400 = vld [vmem:[%s397 + $0x10] sm:$0xff]
    %v401 = vld [vmem:[%s397 + $0x18] sm:$0xff]
    %v402 = vunpack.c.l.bf16 %v398
    %v403 = vunpack.c.h.bf16 %v398
    %v404 = vunpack.c.l.bf16 %v399
    %v405 = vunpack.c.h.bf16 %v399
    %v406 = vunpack.c.l.bf16 %v400
    %v407 = vunpack.c.h.bf16 %v400
    %v408 = vunpack.c.l.bf16 %v401
    %v409 = vunpack.c.h.bf16 %v401
    %410 = vmatprep.subr.bf16.mxu0 %v222
    %411 = vmatpush1.bf16.msra.mxu0 %v221
    %412 = vmatprep.subr.bf16.mxu0 %v218
    %413 = vmatpush1.bf16.msra.mxu0 %v217
    %414 = vmatprep.subr.bf16.mxu0 %v214
    %415 = vmatpush1.bf16.msra.mxu0 %v213
    %416 = vmatprep.subr.bf16.mxu0 %v210
    %417 = vmatpush1.bf16.msra.mxu0 %v209
    %418 = vmatprep.subr.bf16.mxu0 %v206
    %419 = vmatpush1.bf16.msra.mxu0 %v205
    %420 = vmatprep.subr.bf16.mxu0 %v202
    %421 = vmatpush1.bf16.msra.mxu0 %v201
    %422 = vmatprep.subr.bf16.mxu0 %v198
    %423 = vmatpush1.bf16.msra.mxu0 %v197
    %424 = vmatprep.subr.bf16.mxu0 %v194
    %425 = vmatpush1.bf16.msra.mxu0 %v193
    %426 = vmatprep.subr.bf16.mxu0 0
    %427 = vmatpush2.bf16.msra.mxu0 0
    %428 = vmatprep.subr.bf16.mxu0 0
    %429 = vmatpush2.bf16.msra.mxu0 0
    %430 = vmatprep.subr.bf16.mxu0 0
    %431 = vmatpush2.bf16.msra.mxu0 0
    %432 = vmatprep.subr.bf16.mxu0 0
    %433 = vmatpush2.bf16.msra.mxu0 0
    %434 = vmatprep.subr.bf16.mxu0 0
    %435 = vmatpush2.bf16.msra.mxu0 0
    %436 = vmatprep.subr.bf16.mxu0 0
    %437 = vmatpush2.bf16.msra.mxu0 0
    %438 = vmatprep.subr.bf16.mxu0 0
    %439 = vmatpush2.bf16.msra.mxu0 0
    %440 = vmatprep.subr.bf16.mxu0 0
    %441 = vmatpush2.bf16.msra.mxu0 0
    %442 = vmatprep.mubr.bf16.mxu0 0
    %443 = vmatmul.mubr.bf16.gmra.mxu0 %v387
    %v444 = vpop.f32.mrf.mxu0
    %v445 = vadd.f32 0.0, %v444
    %v446 = vpop.f32.mrf.mxu0
    %v447 = vadd.f32 0.0, %v446
    %v448 = vpop.f32.mrf.mxu0
    %v449 = vadd.f32 0.0, %v448
    %v450 = vpop.f32.mrf.mxu0
    %v451 = vadd.f32 0.0, %v450
    %452 = vdwg.mxu0
    %453 = vmatprep.subr.bf16.mxu0 %v224
    %454 = vmatpush1.bf16.msra.mxu0 %v223
    %455 = vmatprep.subr.bf16.mxu0 %v220
    %456 = vmatpush1.bf16.msra.mxu0 %v219
    %457 = vmatprep.subr.bf16.mxu0 %v216
    %458 = vmatpush1.bf16.msra.mxu0 %v215
    %459 = vmatprep.subr.bf16.mxu0 %v212
    %460 = vmatpush1.bf16.msra.mxu0 %v211
    %461 = vmatprep.subr.bf16.mxu0 %v208
    %462 = vmatpush1.bf16.msra.mxu0 %v207
    %463 = vmatprep.subr.bf16.mxu0 %v204
    %464 = vmatpush1.bf16.msra.mxu0 %v203
    %465 = vmatprep.subr.bf16.mxu0 %v200
    %466 = vmatpush1.bf16.msra.mxu0 %v199
    %467 = vmatprep.subr.bf16.mxu0 %v196
    %468 = vmatpush1.bf16.msra.mxu0 %v195
    %469 = vmatprep.subr.bf16.mxu0 0
    %470 = vmatpush2.bf16.msra.mxu0 0
    %471 = vmatprep.subr.bf16.mxu0 0
    %472 = vmatpush2.bf16.msra.mxu0 0
    %473 = vmatprep.subr.bf16.mxu0 0
    %474 = vmatpush2.bf16.msra.mxu0 0
    %475 = vmatprep.subr.bf16.mxu0 0
    %476 = vmatpush2.bf16.msra.mxu0 0
    %477 = vmatprep.subr.bf16.mxu0 0
    %478 = vmatpush2.bf16.msra.mxu0 0
    %479 = vmatprep.subr.bf16.mxu0 0
    %480 = vmatpush2.bf16.msra.mxu0 0
    %481 = vmatprep.subr.bf16.mxu0 0
    %482 = vmatpush2.bf16.msra.mxu0 0
    %483 = vmatprep.subr.bf16.mxu0 0
    %484 = vmatpush2.bf16.msra.mxu0 0
    %485 = vmatprep.mubr.bf16.mxu0 0
    %486 = vmatmul.mubr.bf16.gmra.mxu0 %v387
    %v487 = vpop.f32.mrf.mxu0
    %v488 = vadd.f32 0.0, %v487
    %v489 = vpop.f32.mrf.mxu0
    %v490 = vadd.f32 0.0, %v489
    %v491 = vpop.f32.mrf.mxu0
    %v492 = vadd.f32 0.0, %v491
    %v493 = vpop.f32.mrf.mxu0
    %v494 = vadd.f32 0.0, %v493
    %495 = vdwg.mxu0
    %v496 = vadd.f32 %v402, %v445
    %v497 = vadd.f32 %v403, %v447
    %v498 = vadd.f32 %v404, %v488
    %v499 = vadd.f32 %v405, %v490
    %v500 = vadd.f32 %v406, %v449
    %v501 = vadd.f32 %v407, %v451
    %v502 = vadd.f32 %v408, %v492
    %v503 = vadd.f32 %v409, %v494
    %v504 = vmul.f32 %v496, 0.5
    %v505 = vmul.f32 %v497, 0.5
    %v506 = vmul.f32 %v498, 0.5
    %v507 = vmul.f32 %v500, 0.5
    %v508 = vmul.f32 %v501, 0.5
    %v509 = vmul.f32 %v502, 0.5
    %v510 = vtanh.pop %v504
    %v511 = vtanh.pop %v505
    %v512 = vtanh.pop %v506
    %v513 = vtanh.pop %v507
    %v514 = vtanh.pop %v508
    %v515 = vtanh.pop %v509
    %v516 = vmul.f32 %v510, 0.5
    %v517 = vmul.f32 %v511, 0.5
    %v518 = vmul.f32 %v512, 0.5
    %v519 = vmul.f32 %v513, 0.5
    %v520 = vmul.f32 %v514, 0.5
    %v521 = vmul.f32 %v515, 0.5
    %v522 = vadd.f32 %v516, 0.5
    %v523 = vadd.f32 %v517, 0.5
    %v524 = vadd.f32 %v518, 0.5
    %v525 = vadd.f32 %v519, 0.5
    %v526 = vadd.f32 %v520, 0.5
    %v527 = vadd.f32 %v521, 0.5
    %v528 = vtanh.pop %v499
    %v529 = vtanh.pop %v503
    %v530 = vmul.f32 %v522, %v381
    %v531 = vmul.f32 %v525, %v382
    %v532 = vmul.f32 %v523, %v528
    %v533 = vmul.f32 %v526, %v529
    %v534 = vadd.f32 %v530, %v532
    %v535 = vadd.f32 %v531, %v533
    %v536 = vtanh.pop %v534
    %v537 = vtanh.pop %v535
    %v538 = vmul.f32 %v524, %v536
    %v539 = vmul.f32 %v527, %v537
    %v540 = vpack.c.bf16 %v539, %v538
    %v542 = vunpack.c.l.b16 %v540
    %v543 = vunpack.c.h.b16 %v540
    %v544 = vpack.c.b16 %v542, %v542
    %v545 = vpack.c.b16 %v543, %v543
    %s548 = scalar_lea.vmem [#allocation9], 8
    %549 = vst [vmem:[%s548] sm:$0xf] %v544
    %550 = vst [vmem:[%s548 + $0x4] sm:$0xf] %v545
    %s551 = scalar_lea.vmem [#allocation6], 64
    %v552 = vld [vmem:[%s551] sm:$0xff]
    %v553 = vld [vmem:[%s551 + $0x8] sm:$0xff]
    %v554 = vld [vmem:[%s551 + $0x10] sm:$0xff]
    %v555 = vld [vmem:[%s551 + $0x18] sm:$0xff]
    %v556 = vunpack.c.l.bf16 %v552
    %v557 = vunpack.c.h.bf16 %v552
    %v558 = vunpack.c.l.bf16 %v553
    %v559 = vunpack.c.h.bf16 %v553
    %v560 = vunpack.c.l.bf16 %v554
    %v561 = vunpack.c.h.bf16 %v554
    %v562 = vunpack.c.l.bf16 %v555
    %v563 = vunpack.c.h.bf16 %v555
    %564 = vmatprep.subr.bf16.mxu0 %v222
    %565 = vmatpush1.bf16.msra.mxu0 %v221
    %566 = vmatprep.subr.bf16.mxu0 %v218
    %567 = vmatpush1.bf16.msra.mxu0 %v217
    %568 = vmatprep.subr.bf16.mxu0 %v214
    %569 = vmatpush1.bf16.msra.mxu0 %v213
    %570 = vmatprep.subr.bf16.mxu0 %v210
    %571 = vmatpush1.bf16.msra.mxu0 %v209
    %572 = vmatprep.subr.bf16.mxu0 %v206
    %573 = vmatpush1.bf16.msra.mxu0 %v205
    %574 = vmatprep.subr.bf16.mxu0 %v202
    %575 = vmatpush1.bf16.msra.mxu0 %v201
    %576 = vmatprep.subr.bf16.mxu0 %v198
    %577 = vmatpush1.bf16.msra.mxu0 %v197
    %578 = vmatprep.subr.bf16.mxu0 %v194
    %579 = vmatpush1.bf16.msra.mxu0 %v193
    %580 = vmatprep.subr.bf16.mxu0 0
    %581 = vmatpush2.bf16.msra.mxu0 0
    %582 = vmatprep.subr.bf16.mxu0 0
    %583 = vmatpush2.bf16.msra.mxu0 0
    %584 = vmatprep.subr.bf16.mxu0 0
    %585 = vmatpush2.bf16.msra.mxu0 0
    %586 = vmatprep.subr.bf16.mxu0 0
    %587 = vmatpush2.bf16.msra.mxu0 0
    %588 = vmatprep.subr.bf16.mxu0 0
    %589 = vmatpush2.bf16.msra.mxu0 0
    %590 = vmatprep.subr.bf16.mxu0 0
    %591 = vmatpush2.bf16.msra.mxu0 0
    %592 = vmatprep.subr.bf16.mxu0 0
    %593 = vmatpush2.bf16.msra.mxu0 0
    %594 = vmatprep.subr.bf16.mxu0 0
    %595 = vmatpush2.bf16.msra.mxu0 0
    %596 = vmatprep.mubr.bf16.mxu0 0
    %597 = vmatmul.mubr.bf16.gmra.mxu0 %v540
    %v598 = vpop.f32.mrf.mxu0
    %v599 = vadd.f32 0.0, %v598
    %v600 = vpop.f32.mrf.mxu0
    %v601 = vadd.f32 0.0, %v600
    %v602 = vpop.f32.mrf.mxu0
    %v603 = vadd.f32 0.0, %v602
    %v604 = vpop.f32.mrf.mxu0
    %v605 = vadd.f32 0.0, %v604
    %606 = vdwg.mxu0
    %607 = vmatprep.subr.bf16.mxu0 %v224
    %608 = vmatpush1.bf16.msra.mxu0 %v223
    %609 = vmatprep.subr.bf16.mxu0 %v220
    %610 = vmatpush1.bf16.msra.mxu0 %v219
    %611 = vmatprep.subr.bf16.mxu0 %v216
    %612 = vmatpush1.bf16.msra.mxu0 %v215
    %613 = vmatprep.subr.bf16.mxu0 %v212
    %614 = vmatpush1.bf16.msra.mxu0 %v211
    %615 = vmatprep.subr.bf16.mxu0 %v208
    %616 = vmatpush1.bf16.msra.mxu0 %v207
    %617 = vmatprep.subr.bf16.mxu0 %v204
    %618 = vmatpush1.bf16.msra.mxu0 %v203
    %619 = vmatprep.subr.bf16.mxu0 %v200
    %620 = vmatpush1.bf16.msra.mxu0 %v199
    %621 = vmatprep.subr.bf16.mxu0 %v196
    %622 = vmatpush1.bf16.msra.mxu0 %v195
    %623 = vmatprep.subr.bf16.mxu0 0
    %624 = vmatpush2.bf16.msra.mxu0 0
    %625 = vmatprep.subr.bf16.mxu0 0
    %626 = vmatpush2.bf16.msra.mxu0 0
    %627 = vmatprep.subr.bf16.mxu0 0
    %628 = vmatpush2.bf16.msra.mxu0 0
    %629 = vmatprep.subr.bf16.mxu0 0
    %630 = vmatpush2.bf16.msra.mxu0 0
    %631 = vmatprep.subr.bf16.mxu0 0
    %632 = vmatpush2.bf16.msra.mxu0 0
    %633 = vmatprep.subr.bf16.mxu0 0
    %634 = vmatpush2.bf16.msra.mxu0 0
    %635 = vmatprep.subr.bf16.mxu0 0
    %636 = vmatpush2.bf16.msra.mxu0 0
    %637 = vmatprep.subr.bf16.mxu0 0
    %638 = vmatpush2.bf16.msra.mxu0 0
    %639 = vmatprep.mubr.bf16.mxu0 0
    %640 = vmatmul.mubr.bf16.gmra.mxu0 %v540
    %v641 = vpop.f32.mrf.mxu0
    %v642 = vadd.f32 0.0, %v641
    %v643 = vpop.f32.mrf.mxu0
    %v644 = vadd.f32 0.0, %v643
    %v645 = vpop.f32.mrf.mxu0
    %v646 = vadd.f32 0.0, %v645
    %v647 = vpop.f32.mrf.mxu0
    %v648 = vadd.f32 0.0, %v647
    %649 = vdwg.mxu0
    %v650 = vadd.f32 %v556, %v599
    %v651 = vadd.f32 %v557, %v601
    %v652 = vadd.f32 %v558, %v642
    %v653 = vadd.f32 %v559, %v644
    %v654 = vadd.f32 %v560, %v603
    %v655 = vadd.f32 %v561, %v605
    %v656 = vadd.f32 %v562, %v646
    %v657 = vadd.f32 %v563, %v648
    %v658 = vmul.f32 %v650, 0.5
    %v659 = vmul.f32 %v651, 0.5
    %v660 = vmul.f32 %v652, 0.5
    %v661 = vmul.f32 %v654, 0.5
    %v662 = vmul.f32 %v655, 0.5
    %v663 = vmul.f32 %v656, 0.5
    %v664 = vtanh.pop %v658
    %v665 = vtanh.pop %v659
    %v666 = vtanh.pop %v660
    %v667 = vtanh.pop %v661
    %v668 = vtanh.pop %v662
    %v669 = vtanh.pop %v663
    %v670 = vmul.f32 %v664, 0.5
    %v671 = vmul.f32 %v665, 0.5
    %v672 = vmul.f32 %v666, 0.5
    %v673 = vmul.f32 %v667, 0.5
    %v674 = vmul.f32 %v668, 0.5
    %v675 = vmul.f32 %v669, 0.5
    %v676 = vadd.f32 %v670, 0.5
    %v677 = vadd.f32 %v671, 0.5
    %v678 = vadd.f32 %v672, 0.5
    %v679 = vadd.f32 %v673, 0.5
    %v680 = vadd.f32 %v674, 0.5
    %v681 = vadd.f32 %v675, 0.5
    %v682 = vtanh.pop %v653
    %v683 = vtanh.pop %v657
    %v684 = vmul.f32 %v676, %v534
    %v685 = vmul.f32 %v679, %v535
    %v686 = vmul.f32 %v677, %v682
    %v687 = vmul.f32 %v680, %v683
    %v688 = vadd.f32 %v684, %v686
    %v689 = vadd.f32 %v685, %v687
    %v690 = vtanh.pop %v688
    %v691 = vtanh.pop %v689
    %v692 = vmul.f32 %v678, %v690
    %v693 = vmul.f32 %v681, %v691
    %v694 = vpack.c.bf16 %v693, %v692
    %v696 = vunpack.c.l.b16 %v694
    %v697 = vunpack.c.h.b16 %v694
    %v698 = vpack.c.b16 %v696, %v696
    %v699 = vpack.c.b16 %v697, %v697
    %s702 = scalar_lea.vmem [#allocation9], 16
    %703 = vst [vmem:[%s702] sm:$0xf] %v698
    %704 = vst [vmem:[%s702 + $0x4] sm:$0xf] %v699
    %s705 = scalar_lea.vmem [#allocation6], 96
    %v706 = vld [vmem:[%s705] sm:$0xff]
    %v707 = vld [vmem:[%s705 + $0x8] sm:$0xff]
    %v708 = vld [vmem:[%s705 + $0x10] sm:$0xff]
    %v709 = vld [vmem:[%s705 + $0x18] sm:$0xff]
    %v710 = vunpack.c.l.bf16 %v706
    %v711 = vunpack.c.h.bf16 %v706
    %v712 = vunpack.c.l.bf16 %v707
    %v713 = vunpack.c.h.bf16 %v707
    %v714 = vunpack.c.l.bf16 %v708
    %v715 = vunpack.c.h.bf16 %v708
    %v716 = vunpack.c.l.bf16 %v709
    %v717 = vunpack.c.h.bf16 %v709
    %718 = vmatprep.subr.bf16.mxu0 %v222
    %719 = vmatpush1.bf16.msra.mxu0 %v221
    %720 = vmatprep.subr.bf16.mxu0 %v218
    %721 = vmatpush1.bf16.msra.mxu0 %v217
    %722 = vmatprep.subr.bf16.mxu0 %v214
    %723 = vmatpush1.bf16.msra.mxu0 %v213
    %724 = vmatprep.subr.bf16.mxu0 %v210
    %725 = vmatpush1.bf16.msra.mxu0 %v209
    %726 = vmatprep.subr.bf16.mxu0 %v206
    %727 = vmatpush1.bf16.msra.mxu0 %v205
    %728 = vmatprep.subr.bf16.mxu0 %v202
    %729 = vmatpush1.bf16.msra.mxu0 %v201
    %730 = vmatprep.subr.bf16.mxu0 %v198
    %731 = vmatpush1.bf16.msra.mxu0 %v197
    %732 = vmatprep.subr.bf16.mxu0 %v194
    %733 = vmatpush1.bf16.msra.mxu0 %v193
    %734 = vmatprep.subr.bf16.mxu0 0
    %735 = vmatpush2.bf16.msra.mxu0 0
    %736 = vmatprep.subr.bf16.mxu0 0
    %737 = vmatpush2.bf16.msra.mxu0 0
    %738 = vmatprep.subr.bf16.mxu0 0
    %739 = vmatpush2.bf16.msra.mxu0 0
    %740 = vmatprep.subr.bf16.mxu0 0
    %741 = vmatpush2.bf16.msra.mxu0 0
    %742 = vmatprep.subr.bf16.mxu0 0
    %743 = vmatpush2.bf16.msra.mxu0 0
    %744 = vmatprep.subr.bf16.mxu0 0
    %745 = vmatpush2.bf16.msra.mxu0 0
    %746 = vmatprep.subr.bf16.mxu0 0
    %747 = vmatpush2.bf16.msra.mxu0 0
    %748 = vmatprep.subr.bf16.mxu0 0
    %749 = vmatpush2.bf16.msra.mxu0 0
    %750 = vmatprep.mubr.bf16.mxu0 0
    %751 = vmatmul.mubr.bf16.gmra.mxu0 %v694
    %v752 = vpop.f32.mrf.mxu0
    %v753 = vadd.f32 0.0, %v752
    %v754 = vpop.f32.mrf.mxu0
    %v755 = vadd.f32 0.0, %v754
    %v756 = vpop.f32.mrf.mxu0
    %v757 = vadd.f32 0.0, %v756
    %v758 = vpop.f32.mrf.mxu0
    %v759 = vadd.f32 0.0, %v758
    %760 = vdwg.mxu0
    %761 = vmatprep.subr.bf16.mxu0 %v224
    %762 = vmatpush1.bf16.msra.mxu0 %v223
    %763 = vmatprep.subr.bf16.mxu0 %v220
    %764 = vmatpush1.bf16.msra.mxu0 %v219
    %765 = vmatprep.subr.bf16.mxu0 %v216
    %766 = vmatpush1.bf16.msra.mxu0 %v215
    %767 = vmatprep.subr.bf16.mxu0 %v212
    %768 = vmatpush1.bf16.msra.mxu0 %v211
    %769 = vmatprep.subr.bf16.mxu0 %v208
    %770 = vmatpush1.bf16.msra.mxu0 %v207
    %771 = vmatprep.subr.bf16.mxu0 %v204
    %772 = vmatpush1.bf16.msra.mxu0 %v203
    %773 = vmatprep.subr.bf16.mxu0 %v200
    %774 = vmatpush1.bf16.msra.mxu0 %v199
    %775 = vmatprep.subr.bf16.mxu0 %v196
    %776 = vmatpush1.bf16.msra.mxu0 %v195
    %777 = vmatprep.subr.bf16.mxu0 0
    %778 = vmatpush2.bf16.msra.mxu0 0
    %779 = vmatprep.subr.bf16.mxu0 0
    %780 = vmatpush2.bf16.msra.mxu0 0
    %781 = vmatprep.subr.bf16.mxu0 0
    %782 = vmatpush2.bf16.msra.mxu0 0
    %783 = vmatprep.subr.bf16.mxu0 0
    %784 = vmatpush2.bf16.msra.mxu0 0
    %785 = vmatprep.subr.bf16.mxu0 0
    %786 = vmatpush2.bf16.msra.mxu0 0
    %787 = vmatprep.subr.bf16.mxu0 0
    %788 = vmatpush2.bf16.msra.mxu0 0
    %789 = vmatprep.subr.bf16.mxu0 0
    %790 = vmatpush2.bf16.msra.mxu0 0
    %791 = vmatprep.subr.bf16.mxu0 0
    %792 = vmatpush2.bf16.msra.mxu0 0
    %793 = vmatprep.mubr.bf16.mxu0 0
    %794 = vmatmul.mubr.bf16.gmra.mxu0 %v694
    %v795 = vpop.f32.mrf.mxu0
    %v796 = vadd.f32 0.0, %v795
    %v797 = vpop.f32.mrf.mxu0
    %v798 = vadd.f32 0.0, %v797
    %v799 = vpop.f32.mrf.mxu0
    %v800 = vadd.f32 0.0, %v799
    %v801 = vpop.f32.mrf.mxu0
    %v802 = vadd.f32 0.0, %v801
    %803 = vdwg.mxu0
    %v804 = vadd.f32 %v710, %v753
    %v805 = vadd.f32 %v711, %v755
    %v806 = vadd.f32 %v712, %v796
    %v807 = vadd.f32 %v713, %v798
    %v808 = vadd.f32 %v714, %v757
    %v809 = vadd.f32 %v715, %v759
    %v810 = vadd.f32 %v716, %v800
    %v811 = vadd.f32 %v717, %v802
    %v812 = vmul.f32 %v804, 0.5
    %v813 = vmul.f32 %v805, 0.5
    %v814 = vmul.f32 %v806, 0.5
    %v815 = vmul.f32 %v808, 0.5
    %v816 = vmul.f32 %v809, 0.5
    %v817 = vmul.f32 %v810, 0.5
    %v818 = vtanh.pop %v812
    %v819 = vtanh.pop %v813
    %v820 = vtanh.pop %v814
    %v821 = vtanh.pop %v815
    %v822 = vtanh.pop %v816
    %v823 = vtanh.pop %v817
    %v824 = vmul.f32 %v818, 0.5
    %v825 = vmul.f32 %v819, 0.5
    %v826 = vmul.f32 %v820, 0.5
    %v827 = vmul.f32 %v821, 0.5
    %v828 = vmul.f32 %v822, 0.5
    %v829 = vmul.f32 %v823, 0.5
    %v830 = vadd.f32 %v824, 0.5
    %v831 = vadd.f32 %v825, 0.5
    %v832 = vadd.f32 %v826, 0.5
    %v833 = vadd.f32 %v827, 0.5
    %v834 = vadd.f32 %v828, 0.5
    %v835 = vadd.f32 %v829, 0.5
    %v836 = vtanh.pop %v807
    %v837 = vtanh.pop %v811
    %v838 = vmul.f32 %v830, %v688
    %v839 = vmul.f32 %v833, %v689
    %v840 = vmul.f32 %v831, %v836
    %v841 = vmul.f32 %v834, %v837
    %v842 = vadd.f32 %v838, %v840
    %v843 = vadd.f32 %v839, %v841
    %v844 = vtanh.pop %v842
    %v845 = vtanh.pop %v843
    %v846 = vmul.f32 %v832, %v844
    %v847 = vmul.f32 %v835, %v845
    %v848 = vpack.c.bf16 %v847, %v846
    %v850 = vunpack.c.l.b16 %v848
    %v851 = vunpack.c.h.b16 %v848
    %v852 = vpack.c.b16 %v850, %v850
    %v853 = vpack.c.b16 %v851, %v851
    %s856 = scalar_lea.vmem [#allocation9], 24
    %857 = vst [vmem:[%s856] sm:$0xf] %v852
    %858 = vst [vmem:[%s856 + $0x4] sm:$0xf] %v853
    %s859 = scalar_lea.vmem [#allocation6], 128
    %v860 = vld [vmem:[%s859] sm:$0xff]
    %v861 = vld [vmem:[%s859 + $0x8] sm:$0xff]
    %v862 = vld [vmem:[%s859 + $0x10] sm:$0xff]
    %v863 = vld [vmem:[%s859 + $0x18] sm:$0xff]
    %v864 = vunpack.c.l.bf16 %v860
    %v865 = vunpack.c.h.bf16 %v860
    %v866 = vunpack.c.l.bf16 %v861
    %v867 = vunpack.c.h.bf16 %v861
    %v868 = vunpack.c.l.bf16 %v862
    %v869 = vunpack.c.h.bf16 %v862
    %v870 = vunpack.c.l.bf16 %v863
    %v871 = vunpack.c.h.bf16 %v863
    %872 = vmatprep.subr.bf16.mxu0 %v222
    %873 = vmatpush1.bf16.msra.mxu0 %v221
    %874 = vmatprep.subr.bf16.mxu0 %v218
    %875 = vmatpush1.bf16.msra.mxu0 %v217
    %876 = vmatprep.subr.bf16.mxu0 %v214
    %877 = vmatpush1.bf16.msra.mxu0 %v213
    %878 = vmatprep.subr.bf16.mxu0 %v210
    %879 = vmatpush1.bf16.msra.mxu0 %v209
    %880 = vmatprep.subr.bf16.mxu0 %v206
    %881 = vmatpush1.bf16.msra.mxu0 %v205
    %882 = vmatprep.subr.bf16.mxu0 %v202
    %883 = vmatpush1.bf16.msra.mxu0 %v201
    %884 = vmatprep.subr.bf16.mxu0 %v198
    %885 = vmatpush1.bf16.msra.mxu0 %v197
    %886 = vmatprep.subr.bf16.mxu0 %v194
    %887 = vmatpush1.bf16.msra.mxu0 %v193
    %888 = vmatprep.subr.bf16.mxu0 0
    %889 = vmatpush2.bf16.msra.mxu0 0
    %890 = vmatprep.subr.bf16.mxu0 0
    %891 = vmatpush2.bf16.msra.mxu0 0
    %892 = vmatprep.subr.bf16.mxu0 0
    %893 = vmatpush2.bf16.msra.mxu0 0
    %894 = vmatprep.subr.bf16.mxu0 0
    %895 = vmatpush2.bf16.msra.mxu0 0
    %896 = vmatprep.subr.bf16.mxu0 0
    %897 = vmatpush2.bf16.msra.mxu0 0
    %898 = vmatprep.subr.bf16.mxu0 0
    %899 = vmatpush2.bf16.msra.mxu0 0
    %900 = vmatprep.subr.bf16.mxu0 0
    %901 = vmatpush2.bf16.msra.mxu0 0
    %902 = vmatprep.subr.bf16.mxu0 0
    %903 = vmatpush2.bf16.msra.mxu0 0
    %904 = vmatprep.mubr.bf16.mxu0 0
    %905 = vmatmul.mubr.bf16.gmra.mxu0 %v848
    %v906 = vpop.f32.mrf.mxu0
    %v907 = vadd.f32 0.0, %v906
    %v908 = vpop.f32.mrf.mxu0
    %v909 = vadd.f32 0.0, %v908
    %v910 = vpop.f32.mrf.mxu0
    %v911 = vadd.f32 0.0, %v910
    %v912 = vpop.f32.mrf.mxu0
    %v913 = vadd.f32 0.0, %v912
    %914 = vdwg.mxu0
    %915 = vmatprep.subr.bf16.mxu0 %v224
    %916 = vmatpush1.bf16.msra.mxu0 %v223
    %917 = vmatprep.subr.bf16.mxu0 %v220
    %918 = vmatpush1.bf16.msra.mxu0 %v219
    %919 = vmatprep.subr.bf16.mxu0 %v216
    %920 = vmatpush1.bf16.msra.mxu0 %v215
    %921 = vmatprep.subr.bf16.mxu0 %v212
    %922 = vmatpush1.bf16.msra.mxu0 %v211
    %923 = vmatprep.subr.bf16.mxu0 %v208
    %924 = vmatpush1.bf16.msra.mxu0 %v207
    %925 = vmatprep.subr.bf16.mxu0 %v204
    %926 = vmatpush1.bf16.msra.mxu0 %v203
    %927 = vmatprep.subr.bf16.mxu0 %v200
    %928 = vmatpush1.bf16.msra.mxu0 %v199
    %929 = vmatprep.subr.bf16.mxu0 %v196
    %930 = vmatpush1.bf16.msra.mxu0 %v195
    %931 = vmatprep.subr.bf16.mxu0 0
    %932 = vmatpush2.bf16.msra.mxu0 0
    %933 = vmatprep.subr.bf16.mxu0 0
    %934 = vmatpush2.bf16.msra.mxu0 0
    %935 = vmatprep.subr.bf16.mxu0 0
    %936 = vmatpush2.bf16.msra.mxu0 0
    %937 = vmatprep.subr.bf16.mxu0 0
    %938 = vmatpush2.bf16.msra.mxu0 0
    %939 = vmatprep.subr.bf16.mxu0 0
    %940 = vmatpush2.bf16.msra.mxu0 0
    %941 = vmatprep.subr.bf16.mxu0 0
    %942 = vmatpush2.bf16.msra.mxu0 0
    %943 = vmatprep.subr.bf16.mxu0 0
    %944 = vmatpush2.bf16.msra.mxu0 0
    %945 = vmatprep.subr.bf16.mxu0 0
    %946 = vmatpush2.bf16.msra.mxu0 0
    %947 = vmatprep.mubr.bf16.mxu0 0
    %948 = vmatmul.mubr.bf16.gmra.mxu0 %v848
    %v949 = vpop.f32.mrf.mxu0
    %v950 = vadd.f32 0.0, %v949
    %v951 = vpop.f32.mrf.mxu0
    %v952 = vadd.f32 0.0, %v951
    %v953 = vpop.f32.mrf.mxu0
    %v954 = vadd.f32 0.0, %v953
    %v955 = vpop.f32.mrf.mxu0
    %v956 = vadd.f32 0.0, %v955
    %957 = vdwg.mxu0
    %v958 = vadd.f32 %v864, %v907
    %v959 = vadd.f32 %v865, %v909
    %v960 = vadd.f32 %v866, %v950
    %v961 = vadd.f32 %v867, %v952
    %v962 = vadd.f32 %v868, %v911
    %v963 = vadd.f32 %v869, %v913
    %v964 = vadd.f32 %v870, %v954
    %v965 = vadd.f32 %v871, %v956
    %v966 = vmul.f32 %v958, 0.5
    %v967 = vmul.f32 %v959, 0.5
    %v968 = vmul.f32 %v960, 0.5
    %v969 = vmul.f32 %v962, 0.5
    %v970 = vmul.f32 %v963, 0.5
    %v971 = vmul.f32 %v964, 0.5
    %v972 = vtanh.pop %v966
    %v973 = vtanh.pop %v967
    %v974 = vtanh.pop %v968
    %v975 = vtanh.pop %v969
    %v976 = vtanh.pop %v970
    %v977 = vtanh.pop %v971
    %v978 = vmul.f32 %v972, 0.5
    %v979 = vmul.f32 %v973, 0.5
    %v980 = vmul.f32 %v974, 0.5
    %v981 = vmul.f32 %v975, 0.5
    %v982 = vmul.f32 %v976, 0.5
    %v983 = vmul.f32 %v977, 0.5
    %v984 = vadd.f32 %v978, 0.5
    %v985 = vadd.f32 %v979, 0.5
    %v986 = vadd.f32 %v980, 0.5
    %v987 = vadd.f32 %v981, 0.5
    %v988 = vadd.f32 %v982, 0.5
    %v989 = vadd.f32 %v983, 0.5
    %v990 = vtanh.pop %v961
    %v991 = vtanh.pop %v965
    %v992 = vmul.f32 %v984, %v842
    %v993 = vmul.f32 %v987, %v843
    %v994 = vmul.f32 %v985, %v990
    %v995 = vmul.f32 %v988, %v991
    %v996 = vadd.f32 %v992, %v994
    %v997 = vadd.f32 %v993, %v995
    %v998 = vtanh.pop %v996
    %v999 = vtanh.pop %v997
    %v1000 = vmul.f32 %v986, %v998
    %v1001 = vmul.f32 %v989, %v999
    %v1002 = vpack.c.bf16 %v1001, %v1000
    %v1004 = vunpack.c.l.b16 %v1002
    %v1005 = vunpack.c.h.b16 %v1002
    %v1006 = vpack.c.b16 %v1004, %v1004
    %v1007 = vpack.c.b16 %v1005, %v1005
    %s1010 = scalar_lea.vmem [#allocation9], 32
    %1011 = vst [vmem:[%s1010] sm:$0xf] %v1006
    %1012 = vst [vmem:[%s1010 + $0x4] sm:$0xf] %v1007
    %s1013 = scalar_lea.vmem [#allocation6], 160
    %v1014 = vld [vmem:[%s1013] sm:$0xff]
    %v1015 = vld [vmem:[%s1013 + $0x8] sm:$0xff]
    %v1016 = vld [vmem:[%s1013 + $0x10] sm:$0xff]
    %v1017 = vld [vmem:[%s1013 + $0x18] sm:$0xff]
    %v1018 = vunpack.c.l.bf16 %v1014
    %v1019 = vunpack.c.h.bf16 %v1014
    %v1020 = vunpack.c.l.bf16 %v1015
    %v1021 = vunpack.c.h.bf16 %v1015
    %v1022 = vunpack.c.l.bf16 %v1016
    %v1023 = vunpack.c.h.bf16 %v1016
    %v1024 = vunpack.c.l.bf16 %v1017
    %v1025 = vunpack.c.h.bf16 %v1017
    %1026 = vmatprep.subr.bf16.mxu0 %v222
    %1027 = vmatpush1.bf16.msra.mxu0 %v221
    %1028 = vmatprep.subr.bf16.mxu0 %v218
    %1029 = vmatpush1.bf16.msra.mxu0 %v217
    %1030 = vmatprep.subr.bf16.mxu0 %v214
    %1031 = vmatpush1.bf16.msra.mxu0 %v213
    %1032 = vmatprep.subr.bf16.mxu0 %v210
    %1033 = vmatpush1.bf16.msra.mxu0 %v209
    %1034 = vmatprep.subr.bf16.mxu0 %v206
    %1035 = vmatpush1.bf16.msra.mxu0 %v205
    %1036 = vmatprep.subr.bf16.mxu0 %v202
    %1037 = vmatpush1.bf16.msra.mxu0 %v201
    %1038 = vmatprep.subr.bf16.mxu0 %v198
    %1039 = vmatpush1.bf16.msra.mxu0 %v197
    %1040 = vmatprep.subr.bf16.mxu0 %v194
    %1041 = vmatpush1.bf16.msra.mxu0 %v193
    %1042 = vmatprep.subr.bf16.mxu0 0
    %1043 = vmatpush2.bf16.msra.mxu0 0
    %1044 = vmatprep.subr.bf16.mxu0 0
    %1045 = vmatpush2.bf16.msra.mxu0 0
    %1046 = vmatprep.subr.bf16.mxu0 0
    %1047 = vmatpush2.bf16.msra.mxu0 0
    %1048 = vmatprep.subr.bf16.mxu0 0
    %1049 = vmatpush2.bf16.msra.mxu0 0
    %1050 = vmatprep.subr.bf16.mxu0 0
    %1051 = vmatpush2.bf16.msra.mxu0 0
    %1052 = vmatprep.subr.bf16.mxu0 0
    %1053 = vmatpush2.bf16.msra.mxu0 0
    %1054 = vmatprep.subr.bf16.mxu0 0
    %1055 = vmatpush2.bf16.msra.mxu0 0
    %1056 = vmatprep.subr.bf16.mxu0 0
    %1057 = vmatpush2.bf16.msra.mxu0 0
    %1058 = vmatprep.mubr.bf16.mxu0 0
    %1059 = vmatmul.mubr.bf16.gmra.mxu0 %v1002
    %v1060 = vpop.f32.mrf.mxu0
    %v1061 = vadd.f32 0.0, %v1060
    %v1062 = vpop.f32.mrf.mxu0
    %v1063 = vadd.f32 0.0, %v1062
    %v1064 = vpop.f32.mrf.mxu0
    %v1065 = vadd.f32 0.0, %v1064
    %v1066 = vpop.f32.mrf.mxu0
    %v1067 = vadd.f32 0.0, %v1066
    %1068 = vdwg.mxu0
    %1069 = vmatprep.subr.bf16.mxu0 %v224
    %1070 = vmatpush1.bf16.msra.mxu0 %v223
    %1071 = vmatprep.subr.bf16.mxu0 %v220
    %1072 = vmatpush1.bf16.msra.mxu0 %v219
    %1073 = vmatprep.subr.bf16.mxu0 %v216
    %1074 = vmatpush1.bf16.msra.mxu0 %v215
    %1075 = vmatprep.subr.bf16.mxu0 %v212
    %1076 = vmatpush1.bf16.msra.mxu0 %v211
    %1077 = vmatprep.subr.bf16.mxu0 %v208
    %1078 = vmatpush1.bf16.msra.mxu0 %v207
    %1079 = vmatprep.subr.bf16.mxu0 %v204
    %1080 = vmatpush1.bf16.msra.mxu0 %v203
    %1081 = vmatprep.subr.bf16.mxu0 %v200
    %1082 = vmatpush1.bf16.msra.mxu0 %v199
    %1083 = vmatprep.subr.bf16.mxu0 %v196
    %1084 = vmatpush1.bf16.msra.mxu0 %v195
    %1085 = vmatprep.subr.bf16.mxu0 0
    %1086 = vmatpush2.bf16.msra.mxu0 0
    %1087 = vmatprep.subr.bf16.mxu0 0
    %1088 = vmatpush2.bf16.msra.mxu0 0
    %1089 = vmatprep.subr.bf16.mxu0 0
    %1090 = vmatpush2.bf16.msra.mxu0 0
    %1091 = vmatprep.subr.bf16.mxu0 0
    %1092 = vmatpush2.bf16.msra.mxu0 0
    %1093 = vmatprep.subr.bf16.mxu0 0
    %1094 = vmatpush2.bf16.msra.mxu0 0
    %1095 = vmatprep.subr.bf16.mxu0 0
    %1096 = vmatpush2.bf16.msra.mxu0 0
    %1097 = vmatprep.subr.bf16.mxu0 0
    %1098 = vmatpush2.bf16.msra.mxu0 0
    %1099 = vmatprep.subr.bf16.mxu0 0
    %1100 = vmatpush2.bf16.msra.mxu0 0
    %1101 = vmatprep.mubr.bf16.mxu0 0
    %1102 = vmatmul.mubr.bf16.gmra.mxu0 %v1002
    %v1103 = vpop.f32.mrf.mxu0
    %v1104 = vadd.f32 0.0, %v1103
    %v1105 = vpop.f32.mrf.mxu0
    %v1106 = vadd.f32 0.0, %v1105
    %v1107 = vpop.f32.mrf.mxu0
    %v1108 = vadd.f32 0.0, %v1107
    %v1109 = vpop.f32.mrf.mxu0
    %v1110 = vadd.f32 0.0, %v1109
    %1111 = vdwg.mxu0
    %v1112 = vadd.f32 %v1018, %v1061
    %v1113 = vadd.f32 %v1019, %v1063
    %v1114 = vadd.f32 %v1020, %v1104
    %v1115 = vadd.f32 %v1021, %v1106
    %v1116 = vadd.f32 %v1022, %v1065
    %v1117 = vadd.f32 %v1023, %v1067
    %v1118 = vadd.f32 %v1024, %v1108
    %v1119 = vadd.f32 %v1025, %v1110
    %v1120 = vmul.f32 %v1112, 0.5
    %v1121 = vmul.f32 %v1113, 0.5
    %v1122 = vmul.f32 %v1114, 0.5
    %v1123 = vmul.f32 %v1116, 0.5
    %v1124 = vmul.f32 %v1117, 0.5
    %v1125 = vmul.f32 %v1118, 0.5
    %v1126 = vtanh.pop %v1120
    %v1127 = vtanh.pop %v1121
    %v1128 = vtanh.pop %v1122
    %v1129 = vtanh.pop %v1123
    %v1130 = vtanh.pop %v1124
    %v1131 = vtanh.pop %v1125
    %v1132 = vmul.f32 %v1126, 0.5
    %v1133 = vmul.f32 %v1127, 0.5
    %v1134 = vmul.f32 %v1128, 0.5
    %v1135 = vmul.f32 %v1129, 0.5
    %v1136 = vmul.f32 %v1130, 0.5
    %v1137 = vmul.f32 %v1131, 0.5
    %v1138 = vadd.f32 %v1132, 0.5
    %v1139 = vadd.f32 %v1133, 0.5
    %v1140 = vadd.f32 %v1134, 0.5
    %v1141 = vadd.f32 %v1135, 0.5
    %v1142 = vadd.f32 %v1136, 0.5
    %v1143 = vadd.f32 %v1137, 0.5
    %v1144 = vtanh.pop %v1115
    %v1145 = vtanh.pop %v1119
    %v1146 = vmul.f32 %v1138, %v996
    %v1147 = vmul.f32 %v1141, %v997
    %v1148 = vmul.f32 %v1139, %v1144
    %v1149 = vmul.f32 %v1142, %v1145
    %v1150 = vadd.f32 %v1146, %v1148
    %v1151 = vadd.f32 %v1147, %v1149
    %v1152 = vtanh.pop %v1150
    %v1153 = vtanh.pop %v1151
    %v1154 = vmul.f32 %v1140, %v1152
    %v1155 = vmul.f32 %v1143, %v1153
    %v1156 = vpack.c.bf16 %v1155, %v1154
    %v1158 = vunpack.c.l.b16 %v1156
    %v1159 = vunpack.c.h.b16 %v1156
    %v1160 = vpack.c.b16 %v1158, %v1158
    %v1161 = vpack.c.b16 %v1159, %v1159
    %s1164 = scalar_lea.vmem [#allocation9], 40
    %1165 = vst [vmem:[%s1164] sm:$0xf] %v1160
    %1166 = vst [vmem:[%s1164 + $0x4] sm:$0xf] %v1161
    %s1167 = scalar_lea.vmem [#allocation6], 192
    %v1168 = vld [vmem:[%s1167] sm:$0xff]
    %v1169 = vld [vmem:[%s1167 + $0x8] sm:$0xff]
    %v1170 = vld [vmem:[%s1167 + $0x10] sm:$0xff]
    %v1171 = vld [vmem:[%s1167 + $0x18] sm:$0xff]
    %v1172 = vunpack.c.l.bf16 %v1168
    %v1173 = vunpack.c.h.bf16 %v1168
    %v1174 = vunpack.c.l.bf16 %v1169
    %v1175 = vunpack.c.h.bf16 %v1169
    %v1176 = vunpack.c.l.bf16 %v1170
    %v1177 = vunpack.c.h.bf16 %v1170
    %v1178 = vunpack.c.l.bf16 %v1171
    %v1179 = vunpack.c.h.bf16 %v1171
    %1180 = vmatprep.subr.bf16.mxu0 %v222
    %1181 = vmatpush1.bf16.msra.mxu0 %v221
    %1182 = vmatprep.subr.bf16.mxu0 %v218
    %1183 = vmatpush1.bf16.msra.mxu0 %v217
    %1184 = vmatprep.subr.bf16.mxu0 %v214
    %1185 = vmatpush1.bf16.msra.mxu0 %v213
    %1186 = vmatprep.subr.bf16.mxu0 %v210
    %1187 = vmatpush1.bf16.msra.mxu0 %v209
    %1188 = vmatprep.subr.bf16.mxu0 %v206
    %1189 = vmatpush1.bf16.msra.mxu0 %v205
    %1190 = vmatprep.subr.bf16.mxu0 %v202
    %1191 = vmatpush1.bf16.msra.mxu0 %v201
    %1192 = vmatprep.subr.bf16.mxu0 %v198
    %1193 = vmatpush1.bf16.msra.mxu0 %v197
    %1194 = vmatprep.subr.bf16.mxu0 %v194
    %1195 = vmatpush1.bf16.msra.mxu0 %v193
    %1196 = vmatprep.subr.bf16.mxu0 0
    %1197 = vmatpush2.bf16.msra.mxu0 0
    %1198 = vmatprep.subr.bf16.mxu0 0
    %1199 = vmatpush2.bf16.msra.mxu0 0
    %1200 = vmatprep.subr.bf16.mxu0 0
    %1201 = vmatpush2.bf16.msra.mxu0 0
    %1202 = vmatprep.subr.bf16.mxu0 0
    %1203 = vmatpush2.bf16.msra.mxu0 0
    %1204 = vmatprep.subr.bf16.mxu0 0
    %1205 = vmatpush2.bf16.msra.mxu0 0
    %1206 = vmatprep.subr.bf16.mxu0 0
    %1207 = vmatpush2.bf16.msra.mxu0 0
    %1208 = vmatprep.subr.bf16.mxu0 0
    %1209 = vmatpush2.bf16.msra.mxu0 0
    %1210 = vmatprep.subr.bf16.mxu0 0
    %1211 = vmatpush2.bf16.msra.mxu0 0
    %1212 = vmatprep.mubr.bf16.mxu0 0
    %1213 = vmatmul.mubr.bf16.gmra.mxu0 %v1156
    %v1214 = vpop.f32.mrf.mxu0
    %v1215 = vadd.f32 0.0, %v1214
    %v1216 = vpop.f32.mrf.mxu0
    %v1217 = vadd.f32 0.0, %v1216
    %v1218 = vpop.f32.mrf.mxu0
    %v1219 = vadd.f32 0.0, %v1218
    %v1220 = vpop.f32.mrf.mxu0
    %v1221 = vadd.f32 0.0, %v1220
    %1222 = vdwg.mxu0
    %1223 = vmatprep.subr.bf16.mxu0 %v224
    %1224 = vmatpush1.bf16.msra.mxu0 %v223
    %1225 = vmatprep.subr.bf16.mxu0 %v220
    %1226 = vmatpush1.bf16.msra.mxu0 %v219
    %1227 = vmatprep.subr.bf16.mxu0 %v216
    %1228 = vmatpush1.bf16.msra.mxu0 %v215
    %1229 = vmatprep.subr.bf16.mxu0 %v212
    %1230 = vmatpush1.bf16.msra.mxu0 %v211
    %1231 = vmatprep.subr.bf16.mxu0 %v208
    %1232 = vmatpush1.bf16.msra.mxu0 %v207
    %1233 = vmatprep.subr.bf16.mxu0 %v204
    %1234 = vmatpush1.bf16.msra.mxu0 %v203
    %1235 = vmatprep.subr.bf16.mxu0 %v200
    %1236 = vmatpush1.bf16.msra.mxu0 %v199
    %1237 = vmatprep.subr.bf16.mxu0 %v196
    %1238 = vmatpush1.bf16.msra.mxu0 %v195
    %1239 = vmatprep.subr.bf16.mxu0 0
    %1240 = vmatpush2.bf16.msra.mxu0 0
    %1241 = vmatprep.subr.bf16.mxu0 0
    %1242 = vmatpush2.bf16.msra.mxu0 0
    %1243 = vmatprep.subr.bf16.mxu0 0
    %1244 = vmatpush2.bf16.msra.mxu0 0
    %1245 = vmatprep.subr.bf16.mxu0 0
    %1246 = vmatpush2.bf16.msra.mxu0 0
    %1247 = vmatprep.subr.bf16.mxu0 0
    %1248 = vmatpush2.bf16.msra.mxu0 0
    %1249 = vmatprep.subr.bf16.mxu0 0
    %1250 = vmatpush2.bf16.msra.mxu0 0
    %1251 = vmatprep.subr.bf16.mxu0 0
    %1252 = vmatpush2.bf16.msra.mxu0 0
    %1253 = vmatprep.subr.bf16.mxu0 0
    %1254 = vmatpush2.bf16.msra.mxu0 0
    %1255 = vmatprep.mubr.bf16.mxu0 0
    %1256 = vmatmul.mubr.bf16.gmra.mxu0 %v1156
    %v1257 = vpop.f32.mrf.mxu0
    %v1258 = vadd.f32 0.0, %v1257
    %v1259 = vpop.f32.mrf.mxu0
    %v1260 = vadd.f32 0.0, %v1259
    %v1261 = vpop.f32.mrf.mxu0
    %v1262 = vadd.f32 0.0, %v1261
    %v1263 = vpop.f32.mrf.mxu0
    %v1264 = vadd.f32 0.0, %v1263
    %1265 = vdwg.mxu0
    %v1266 = vadd.f32 %v1172, %v1215
    %v1267 = vadd.f32 %v1173, %v1217
    %v1268 = vadd.f32 %v1174, %v1258
    %v1269 = vadd.f32 %v1175, %v1260
    %v1270 = vadd.f32 %v1176, %v1219
    %v1271 = vadd.f32 %v1177, %v1221
    %v1272 = vadd.f32 %v1178, %v1262
    %v1273 = vadd.f32 %v1179, %v1264
    %v1274 = vmul.f32 %v1266, 0.5
    %v1275 = vmul.f32 %v1267, 0.5
    %v1276 = vmul.f32 %v1268, 0.5
    %v1277 = vmul.f32 %v1270, 0.5
    %v1278 = vmul.f32 %v1271, 0.5
    %v1279 = vmul.f32 %v1272, 0.5
    %v1280 = vtanh.pop %v1274
    %v1281 = vtanh.pop %v1275
    %v1282 = vtanh.pop %v1276
    %v1283 = vtanh.pop %v1277
    %v1284 = vtanh.pop %v1278
    %v1285 = vtanh.pop %v1279
    %v1286 = vmul.f32 %v1280, 0.5
    %v1287 = vmul.f32 %v1281, 0.5
    %v1288 = vmul.f32 %v1282, 0.5
    %v1289 = vmul.f32 %v1283, 0.5
    %v1290 = vmul.f32 %v1284, 0.5
    %v1291 = vmul.f32 %v1285, 0.5
    %v1292 = vadd.f32 %v1286, 0.5
    %v1293 = vadd.f32 %v1287, 0.5
    %v1294 = vadd.f32 %v1288, 0.5
    %v1295 = vadd.f32 %v1289, 0.5
    %v1296 = vadd.f32 %v1290, 0.5
    %v1297 = vadd.f32 %v1291, 0.5
    %v1298 = vtanh.pop %v1269
    %v1299 = vtanh.pop %v1273
    %v1300 = vmul.f32 %v1292, %v1150
    %v1301 = vmul.f32 %v1295, %v1151
    %v1302 = vmul.f32 %v1293, %v1298
    %v1303 = vmul.f32 %v1296, %v1299
    %v1304 = vadd.f32 %v1300, %v1302
    %v1305 = vadd.f32 %v1301, %v1303
    %v1306 = vtanh.pop %v1304
    %v1307 = vtanh.pop %v1305
    %v1308 = vmul.f32 %v1294, %v1306
    %v1309 = vmul.f32 %v1297, %v1307
    %v1310 = vpack.c.bf16 %v1309, %v1308
    %v1312 = vunpack.c.l.b16 %v1310
    %v1313 = vunpack.c.h.b16 %v1310
    %v1314 = vpack.c.b16 %v1312, %v1312
    %v1315 = vpack.c.b16 %v1313, %v1313
    %s1318 = scalar_lea.vmem [#allocation9], 48
    %1319 = vst [vmem:[%s1318] sm:$0xf] %v1314
    %1320 = vst [vmem:[%s1318 + $0x4] sm:$0xf] %v1315
    %s1321 = scalar_lea.vmem [#allocation6], 224
    %v1322 = vld [vmem:[%s1321] sm:$0xff]
    %v1323 = vld [vmem:[%s1321 + $0x8] sm:$0xff]
    %v1324 = vld [vmem:[%s1321 + $0x10] sm:$0xff]
    %v1325 = vld [vmem:[%s1321 + $0x18] sm:$0xff]
    %v1326 = vunpack.c.l.bf16 %v1322
    %v1327 = vunpack.c.h.bf16 %v1322
    %v1328 = vunpack.c.l.bf16 %v1323
    %v1329 = vunpack.c.h.bf16 %v1323
    %v1330 = vunpack.c.l.bf16 %v1324
    %v1331 = vunpack.c.h.bf16 %v1324
    %v1332 = vunpack.c.l.bf16 %v1325
    %v1333 = vunpack.c.h.bf16 %v1325
    %1334 = vmatprep.subr.bf16.mxu0 %v222
    %1335 = vmatpush1.bf16.msra.mxu0 %v221
    %1336 = vmatprep.subr.bf16.mxu0 %v218
    %1337 = vmatpush1.bf16.msra.mxu0 %v217
    %1338 = vmatprep.subr.bf16.mxu0 %v214
    %1339 = vmatpush1.bf16.msra.mxu0 %v213
    %1340 = vmatprep.subr.bf16.mxu0 %v210
    %1341 = vmatpush1.bf16.msra.mxu0 %v209
    %1342 = vmatprep.subr.bf16.mxu0 %v206
    %1343 = vmatpush1.bf16.msra.mxu0 %v205
    %1344 = vmatprep.subr.bf16.mxu0 %v202
    %1345 = vmatpush1.bf16.msra.mxu0 %v201
    %1346 = vmatprep.subr.bf16.mxu0 %v198
    %1347 = vmatpush1.bf16.msra.mxu0 %v197
    %1348 = vmatprep.subr.bf16.mxu0 %v194
    %1349 = vmatpush1.bf16.msra.mxu0 %v193
    %1350 = vmatprep.subr.bf16.mxu0 0
    %1351 = vmatpush2.bf16.msra.mxu0 0
    %1352 = vmatprep.subr.bf16.mxu0 0
    %1353 = vmatpush2.bf16.msra.mxu0 0
    %1354 = vmatprep.subr.bf16.mxu0 0
    %1355 = vmatpush2.bf16.msra.mxu0 0
    %1356 = vmatprep.subr.bf16.mxu0 0
    %1357 = vmatpush2.bf16.msra.mxu0 0
    %1358 = vmatprep.subr.bf16.mxu0 0
    %1359 = vmatpush2.bf16.msra.mxu0 0
    %1360 = vmatprep.subr.bf16.mxu0 0
    %1361 = vmatpush2.bf16.msra.mxu0 0
    %1362 = vmatprep.subr.bf16.mxu0 0
    %1363 = vmatpush2.bf16.msra.mxu0 0
    %1364 = vmatprep.subr.bf16.mxu0 0
    %1365 = vmatpush2.bf16.msra.mxu0 0
    %1366 = vmatprep.mubr.bf16.mxu0 0
    %1367 = vmatmul.mubr.bf16.gmra.mxu0 %v1310
    %v1368 = vpop.f32.mrf.mxu0
    %v1369 = vadd.f32 0.0, %v1368
    %v1370 = vpop.f32.mrf.mxu0
    %v1371 = vadd.f32 0.0, %v1370
    %v1372 = vpop.f32.mrf.mxu0
    %v1373 = vadd.f32 0.0, %v1372
    %v1374 = vpop.f32.mrf.mxu0
    %v1375 = vadd.f32 0.0, %v1374
    %1376 = vdwg.mxu0
    %1377 = vmatprep.subr.bf16.mxu0 %v224
    %1378 = vmatpush1.bf16.msra.mxu0 %v223
    %1379 = vmatprep.subr.bf16.mxu0 %v220
    %1380 = vmatpush1.bf16.msra.mxu0 %v219
    %1381 = vmatprep.subr.bf16.mxu0 %v216
    %1382 = vmatpush1.bf16.msra.mxu0 %v215
    %1383 = vmatprep.subr.bf16.mxu0 %v212
    %1384 = vmatpush1.bf16.msra.mxu0 %v211
    %1385 = vmatprep.subr.bf16.mxu0 %v208
    %1386 = vmatpush1.bf16.msra.mxu0 %v207
    %1387 = vmatprep.subr.bf16.mxu0 %v204
    %1388 = vmatpush1.bf16.msra.mxu0 %v203
    %1389 = vmatprep.subr.bf16.mxu0 %v200
    %1390 = vmatpush1.bf16.msra.mxu0 %v199
    %1391 = vmatprep.subr.bf16.mxu0 %v196
    %1392 = vmatpush1.bf16.msra.mxu0 %v195
    %1393 = vmatprep.subr.bf16.mxu0 0
    %1394 = vmatpush2.bf16.msra.mxu0 0
    %1395 = vmatprep.subr.bf16.mxu0 0
    %1396 = vmatpush2.bf16.msra.mxu0 0
    %1397 = vmatprep.subr.bf16.mxu0 0
    %1398 = vmatpush2.bf16.msra.mxu0 0
    %1399 = vmatprep.subr.bf16.mxu0 0
    %1400 = vmatpush2.bf16.msra.mxu0 0
    %1401 = vmatprep.subr.bf16.mxu0 0
    %1402 = vmatpush2.bf16.msra.mxu0 0
    %1403 = vmatprep.subr.bf16.mxu0 0
    %1404 = vmatpush2.bf16.msra.mxu0 0
    %1405 = vmatprep.subr.bf16.mxu0 0
    %1406 = vmatpush2.bf16.msra.mxu0 0
    %1407 = vmatprep.subr.bf16.mxu0 0
    %1408 = vmatpush2.bf16.msra.mxu0 0
    %1409 = vmatprep.mubr.bf16.mxu0 0
    %1410 = vmatmul.mubr.bf16.gmra.mxu0 %v1310
    %v1411 = vpop.f32.mrf.mxu0
    %v1412 = vadd.f32 0.0, %v1411
    %v1413 = vpop.f32.mrf.mxu0
    %v1414 = vadd.f32 0.0, %v1413
    %v1415 = vpop.f32.mrf.mxu0
    %v1416 = vadd.f32 0.0, %v1415
    %v1417 = vpop.f32.mrf.mxu0
    %v1418 = vadd.f32 0.0, %v1417
    %1419 = vdwg.mxu0
    %v1420 = vadd.f32 %v1326, %v1369
    %v1421 = vadd.f32 %v1327, %v1371
    %v1422 = vadd.f32 %v1328, %v1412
    %v1423 = vadd.f32 %v1329, %v1414
    %v1424 = vadd.f32 %v1330, %v1373
    %v1425 = vadd.f32 %v1331, %v1375
    %v1426 = vadd.f32 %v1332, %v1416
    %v1427 = vadd.f32 %v1333, %v1418
    %v1428 = vmul.f32 %v1420, 0.5
    %v1429 = vmul.f32 %v1421, 0.5
    %v1430 = vmul.f32 %v1422, 0.5
    %v1431 = vmul.f32 %v1424, 0.5
    %v1432 = vmul.f32 %v1425, 0.5
    %v1433 = vmul.f32 %v1426, 0.5
    %v1434 = vtanh.pop %v1428
    %v1435 = vtanh.pop %v1429
    %v1436 = vtanh.pop %v1430
    %v1437 = vtanh.pop %v1431
    %v1438 = vtanh.pop %v1432
    %v1439 = vtanh.pop %v1433
    %v1440 = vmul.f32 %v1434, 0.5
    %v1441 = vmul.f32 %v1435, 0.5
    %v1442 = vmul.f32 %v1436, 0.5
    %v1443 = vmul.f32 %v1437, 0.5
    %v1444 = vmul.f32 %v1438, 0.5
    %v1445 = vmul.f32 %v1439, 0.5
    %v1446 = vadd.f32 %v1440, 0.5
    %v1447 = vadd.f32 %v1441, 0.5
    %v1448 = vadd.f32 %v1442, 0.5
    %v1449 = vadd.f32 %v1443, 0.5
    %v1450 = vadd.f32 %v1444, 0.5
    %v1451 = vadd.f32 %v1445, 0.5
    %v1452 = vtanh.pop %v1423
    %v1453 = vtanh.pop %v1427
    %v1454 = vmul.f32 %v1446, %v1304
    %v1455 = vmul.f32 %v1449, %v1305
    %v1456 = vmul.f32 %v1447, %v1452
    %v1457 = vmul.f32 %v1450, %v1453
    %v1458 = vadd.f32 %v1454, %v1456
    %v1459 = vadd.f32 %v1455, %v1457
    %v1460 = vtanh.pop %v1458
    %v1461 = vtanh.pop %v1459
    %v1462 = vmul.f32 %v1448, %v1460
    %v1463 = vmul.f32 %v1451, %v1461
    %v1464 = vpack.c.bf16 %v1463, %v1462
    %v1466 = vunpack.c.l.b16 %v1464
    %v1467 = vunpack.c.h.b16 %v1464
    %v1468 = vpack.c.b16 %v1466, %v1466
    %v1469 = vpack.c.b16 %v1467, %v1467
    %s1472 = scalar_lea.vmem [#allocation9], 56
    %1473 = vst [vmem:[%s1472] sm:$0xf] %v1468
    %1474 = vst [vmem:[%s1472 + $0x4] sm:$0xf] %v1469
    %1475 = vst [vmem:[#allocation3] sm:$0xff] %v1462
    %1476 = vst [vmem:[#allocation3 + $0x8] sm:$0xff] %v1463
    %1477 = vst [vmem:[#allocation4] sm:$0xff] %v1458
    %1478 = vst [vmem:[#allocation4 + $0x8] sm:$0xff] %v1459
    // Predicated region
    $region18: #{_lstm_recurrence.1} parent=1 // pred_check
      _
    $region19: #{_lstm_recurrence.1} parent=1 // pred_check_branch
      %1480 = sbr.rel (0) target = $region21
    $region20: #{_lstm_recurrence.1} parent=1 // pred_region
      %s1482 = ssub.s32 1024, 1024
      %1483 = vsyncadd [#allocation8], %s1482
      %s1484 = sshll.u32 [#allocation9], 4
      %s1485 = int_to_ptr.vmem [resolvable:$true] %s1484
      %1490 = dma.vmem_to_hbm [thread:$0]  %s1485, 1024, %s2, [#allocation8], 64, 64, 4
    $region21: #{_lstm_recurrence.1} parent=1 // pred_fallthru
      _
    // Predicated region
    $region22: #{_lstm_recurrence.1} parent=1 // pred_check
      _
    $region23: #{_lstm_recurrence.1} parent=1 // pred_check_branch
      %1492 = sbr.rel (0) target = $region25
    $region24: #{_lstm_recurrence.1} parent=1 // pred_region
      %1493 = dma.done [#allocation8], 1024
    $region25: #{_lstm_recurrence.1} parent=1 // pred_fallthru
      _
    %1494 = vsyncpa [#allocation7], 1
    %1495 = vsyncpa [#allocation8], 1
  %1496 = vsyncmov [#allocation5]
  %s1497 = vpop.sfrf %1496
  %p1498 = scmp.eq.s32.totalorder %s1497, 0
  %p1499 = pneg %p1498
  %1501 = shalt.err (%p1499)

</llo_original>
